<compile_context>
chip_gen: v6e
topology: v6e:2x2x1
jax: 0.10.0
libtpu: 0.0.40
codegen_flags: <defaults>
</compile_context>

<pallas_src>
import functools
import math

import jax
import jax.numpy as jnp
from jax import lax
from jax.experimental import pallas as pl
from jax.experimental.pallas import tpu as pltpu

LANE = 128
SUBLANE = 8


def _round_up(x, m):
    return ((x + m - 1) // m) * m


# ----------------------------------------------------------------------------
# Fused Pallas kernel: all GIN layers + readout in one body
# ----------------------------------------------------------------------------

def make_fused_gin0_kernel(num_layers):
    def kernel(a_ref, x_ref, p_ref,
               w1s_ref, b1s_ref, w2s_ref, b2s_ref,
               lw1s_ref, lb1_ref, lw2_ref, lb2_ref, out_ref):
        a_hat = a_ref[...]                       # (N, N)     bf16, A + I
        p = p_ref[...]                           # (Gpad, N)  bf16 pooling matrix
        gpad = p.shape[0]
        hpad = lw1s_ref.shape[2]                 # lane-padded hidden width

        def layer_body(l, carry):
            h, pooled_acc = carry
            # GINConv(eps=0): (1+eps)*x_i + sum_{j in N(i)} x_j == (A_hat @ H)_i
            agg = jnp.dot(a_hat, h, preferred_element_type=jnp.float32)
            # MLP: Linear+BN(folded)+ReLU, twice.  bf16 matmuls, f32 epilogue
            # fused straight into the bf16 re-cast (single store-side pass).
            z = jnp.dot(agg.astype(jnp.bfloat16), w1s_ref[l],
                        preferred_element_type=jnp.float32) + b1s_ref[l]
            z = jnp.maximum(z, 0.0)
            z = jnp.dot(z.astype(jnp.bfloat16), w2s_ref[l],
                        preferred_element_type=jnp.float32) + b2s_ref[l]
            z = jnp.maximum(z, 0.0)
            h_new = z.astype(jnp.bfloat16)       # feeds next layer's matmuls
            # global_add_pool(cat(xs,1)) @ W1 == sum_l (P @ h_l) @ W1_block_l
            pooled_l = jnp.dot(p, h_new, preferred_element_type=jnp.float32)
            pooled_acc = pooled_acc + jnp.dot(
                pooled_l.astype(jnp.bfloat16), lw1s_ref[l],
                preferred_element_type=jnp.float32)
            return h_new, pooled_acc

        h0 = x_ref[...]                          # (N, PAD) bf16, zero-padded feats
        pooled0 = jnp.zeros((gpad, hpad), jnp.float32)
        _, pooled_acc = lax.fori_loop(0, num_layers, layer_body,
                                      (h0, pooled0), unroll=True)

        hh = jnp.maximum(pooled_acc + lb1_ref[...], 0.0)   # relu(lin1(pooled))
        # TODO(synk): F.dropout(p=0.5) is identity in eval mode.
        logits = jnp.dot(hh.astype(jnp.bfloat16), lw2_ref[...],
                         preferred_element_type=jnp.float32) + lb2_ref[...]
        m = jnp.max(logits, axis=-1, keepdims=True)
        lse = jnp.log(jnp.sum(jnp.exp(logits - m), axis=-1, keepdims=True)) + m
        out_ref[...] = (logits - lse).astype(out_ref.dtype)  # lane-dense (8,128)

    return kernel


def gin0_fused(a_hat, x_pad, pool_pad,
               w1s, b1s, w2s, b2s, lw1s, lb1, lw2p, lb2p):
    num_layers, dpad, hpad = w1s.shape
    n = a_hat.shape[0]
    gpad = pool_pad.shape[0]
    cpad = lw2p.shape[1]
    # Carry consistency for the layer loop + stacked lin1 blocks.
    assert x_pad.shape[1] == dpad and dpad == hpad
    assert lw1s.shape[1:] == (hpad, hpad)

    inputs = [a_hat, x_pad, pool_pad, w1s, b1s, w2s, b2s, lw1s, lb1, lw2p, lb2p]

    def nbytes(a):
        return int(a.size) * a.dtype.itemsize

    in_bytes = sum(nbytes(a) for a in inputs)
    out_bytes = gpad * cpad * 4
    # f32 intermediates materialized per layer (agg/z live + pooled/acc) + h bf16.
    interm_bytes = (3 * n * hpad + 2 * gpad * hpad) * 4 + n * hpad * 2
    footprint = in_bytes + out_bytes + interm_bytes

    try:
        vmem_cap = pltpu.get_tpu_info().vmem_capacity_bytes   # 64 MiB v7x, 128 MiB v5e/v6e
    except Exception:
        vmem_cap = 64 * 1024 * 1024
    vmem_limit = int(min(0.9 * vmem_cap, max(2 * footprint, 8 * 1024 * 1024)))
    # Generation-gated residency check (v7x trips first: 64 MiB VMEM/TC).
    # TODO(synk): when this trips, fall back to a tiled grid path instead of
    #             the fully-resident single-block kernel (see file header).
    assert footprint <= vmem_limit, (
        f"GIN0 fused kernel footprint {footprint} B exceeds VMEM limit "
        f"{vmem_limit} B; tiled fallback not implemented.")

    flops = (
        num_layers * (2 * n * n * hpad           # A_hat @ H
                      + 2 * 2 * n * hpad * hpad  # two MLP matmuls
                      + 2 * gpad * n * hpad      # P @ h_l
                      + 2 * gpad * hpad * hpad)  # (P @ h_l) @ W1_block_l
        + 2 * gpad * hpad * cpad)                # lin2
    cost = pl.CostEstimate(flops=flops,
                           transcendentals=gpad * cpad + gpad,
                           bytes_accessed=in_bytes + out_bytes)

    kernel = make_fused_gin0_kernel(num_layers)
    return pl.pallas_call(
        kernel,
        out_shape=jax.ShapeDtypeStruct((gpad, cpad), jnp.float32),
        in_specs=[pl.BlockSpec(memory_space=pltpu.MemorySpace.VMEM)] * len(inputs),
        out_specs=pl.BlockSpec(memory_space=pltpu.MemorySpace.VMEM),
        compiler_params=pltpu.CompilerParams(vmem_limit_bytes=vmem_limit),
        cost_estimate=cost,
    )(*inputs)


# ----------------------------------------------------------------------------
# Parameter construction (deterministic, synthetic) + eval-mode BN folding
# ----------------------------------------------------------------------------

def make_linear(key, fan_in, fan_out):
    kw, kb = jax.random.split(key)
    bound = 1.0 / math.sqrt(fan_in)
    w = jax.random.uniform(kw, (fan_in, fan_out), jnp.float32, -bound, bound)
    b = jax.random.uniform(kb, (1, fan_out), jnp.float32, -bound, bound)
    return w, b


def make_bn(hidden, eps=1e-5):
    # gamma=1, beta=0, running_mean=0, running_var=1 (PyTorch defaults), eval mode.
    gamma = jnp.ones((1, hidden), jnp.float32)
    beta = jnp.zeros((1, hidden), jnp.float32)
    running_mean = jnp.zeros((1, hidden), jnp.float32)
    running_var = jnp.ones((1, hidden), jnp.float32)
    scale = gamma / jnp.sqrt(running_var + eps)
    shift = beta - running_mean * scale
    return scale, shift


def fold_bn_into_linear(w, b, scale, shift):
    # eval-mode BN(x@W + b) = x@(W*scale) + (b*scale + shift)
    return w * scale, b * scale + shift


def pad2d(a, rows, cols):
    # Zero-pad a 2-D f32 array to (rows, cols); padding is exact through the
    # network (zero weight rows/cols + zero bias + ReLU keep padded lanes at 0).
    out = jnp.zeros((rows, cols), a.dtype)
    return out.at[:a.shape[0], :a.shape[1]].set(a)


# ----------------------------------------------------------------------------
# GIN0 forward (single fused Pallas call; glue in plain JAX)
# ----------------------------------------------------------------------------

@functools.partial(jax.jit, static_argnames=("num_graphs", "num_classes"))
def gin0_forward(a_hat, x_pad, pool_pad, params, num_graphs, num_classes):
    out_pad = gin0_fused(a_hat, x_pad, pool_pad, *params)
    return out_pad[:num_graphs, :num_classes]


if __name__ == "__main__":
    # Small synthetic problem consistent with the module's forward.
    num_nodes = 32
    num_features = 16
    hidden = 32
    num_layers = 3
    num_classes = 4
    num_graphs = 2

    pad = max(_round_up(num_features, LANE), _round_up(hidden, LANE))   # 128
    cpad = _round_up(num_classes, LANE)                                 # 128
    gpad = _round_up(num_graphs, SUBLANE)                               # 8

    key = jax.random.PRNGKey(0)
    k_x, k_e, k_p = jax.random.split(key, 3)

    # Node features, zero-padded to the lane-dense slab (bf16 MXU operands).
    x = jax.random.normal(k_x, (num_nodes, num_features), jnp.float32)
    x_pad = jnp.zeros((num_nodes, pad), jnp.bfloat16)
    x_pad = x_pad.at[:, :num_features].set(x.astype(jnp.bfloat16))

    # Deterministic edge_index (2, E): a ring plus random edges, made symmetric.
    src_ring = jnp.arange(num_nodes)
    dst_ring = (src_ring + 1) % num_nodes
    rnd_src = jax.random.randint(k_e, (24,), 0, num_nodes)
    rnd_dst = jax.random.randint(jax.random.fold_in(k_e, 1), (24,), 0, num_nodes)
    src = jnp.concatenate([src_ring, dst_ring, rnd_src, rnd_dst])
    dst = jnp.concatenate([dst_ring, src_ring, rnd_dst, rnd_src])
    edge_index = jnp.stack([src, dst])                      # (2, E), src -> dst

    # Dense adjacency (duplicate edges accumulate like PyG scatter-add) + I.
    adj = jnp.zeros((num_nodes, num_nodes), jnp.float32)
    adj = adj.at[edge_index[1], edge_index[0]].add(1.0)
    a_hat_f32 = adj + jnp.eye(num_nodes, dtype=jnp.float32)
    assert float(a_hat_f32.max()) <= 256.0, "bf16 A_hat exactness bound exceeded"
    a_hat = a_hat_f32.astype(jnp.bfloat16)

    # batch vector: first half -> graph 0, second half -> graph 1.  Pooling
    # matrix padded to 8 sublanes; padded graph rows are all-zero.
    batch = jnp.concatenate([
        jnp.zeros((num_nodes // 2,), jnp.int32),
        jnp.ones((num_nodes - num_nodes // 2,), jnp.int32),
    ])
    pool_pad = (batch[None, :] == jnp.arange(gpad)[:, None]).astype(jnp.bfloat16)

    # Deterministic parameters (BN folded, lane-padded, stacked along L).
    k_layers, k_lin1, k_lin2 = jax.random.split(k_p, 3)
    layer_keys = jax.random.split(k_layers, num_layers)

    w1_list, b1_list, w2_list, b2_list = [], [], [], []
    for l in range(num_layers):
        fan_in = num_features if l == 0 else hidden
        k1, k2 = jax.random.split(layer_keys[l])
        w1, b1 = make_linear(k1, fan_in, hidden)
        w1, b1 = fold_bn_into_linear(w1, b1, *make_bn(hidden))
        w2, b2 = make_linear(k2, hidden, hidden)
        w2, b2 = fold_bn_into_linear(w2, b2, *make_bn(hidden))
        w1_list.append(pad2d(w1, pad, pad).astype(jnp.bfloat16))
        b1_list.append(pad2d(b1, 1, pad))
        w2_list.append(pad2d(w2, pad, pad).astype(jnp.bfloat16))
        b2_list.append(pad2d(b2, 1, pad))
    w1s = jnp.stack(w1_list)          # (L, PAD, PAD) bf16
    b1s = jnp.stack(b1_list)          # (L, 1, PAD)   f32
    w2s = jnp.stack(w2_list)          # (L, PAD, PAD) bf16
    b2s = jnp.stack(b2_list)          # (L, 1, PAD)   f32

    # lin1 (L*hidden, hidden): split into per-layer row blocks, pad, stack.
    lw1, lb1 = make_linear(k_lin1, num_layers * hidden, hidden)
    lw1s = jnp.stack([
        pad2d(lw1[l * hidden:(l + 1) * hidden, :], pad, pad).astype(jnp.bfloat16)
        for l in range(num_layers)])  # (L, PAD, PAD) bf16
    lb1p = pad2d(lb1, 1, pad)         # (1, PAD) f32, padded cols 0 (ReLU keeps 0)

    # lin2 (hidden, classes) -> lane-dense (PAD, 128): padded class lanes get
    # zero weight and -1e9 bias so they vanish under log_softmax.
    lw2, lb2 = make_linear(k_lin2, hidden, num_classes)
    lw2p = jnp.zeros((pad, cpad), jnp.float32).at[:hidden, :num_classes].set(lw2)
    lb2p = jnp.full((1, cpad), -1e9, jnp.float32).at[:, :num_classes].set(lb2)
    lw2p = lw2p.astype(jnp.bfloat16)

    params = (w1s, b1s, w2s, b2s, lw1s, lb1p, lw2p, lb2p)

    out = gin0_forward(a_hat, x_pad, pool_pad, params, num_graphs, num_classes)
    out = jax.block_until_ready(out)

    # Pure-JAX reference (same folded/padded bf16 parameters, plain XLA ops).
    h = x_pad
    pooled = jnp.zeros((gpad, pad), jnp.float32)
    for l in range(num_layers):
        agg = jnp.dot(a_hat, h, preferred_element_type=jnp.float32)
        z = jnp.dot(agg.astype(jnp.bfloat16), w1s[l],
                    preferred_element_type=jnp.float32) + b1s[l]
        z = jnp.maximum(z, 0.0)
        z = jnp.dot(z.astype(jnp.bfloat16), w2s[l],
                    preferred_element_type=jnp.float32) + b2s[l]
        z = jnp.maximum(z, 0.0)
        h = z.astype(jnp.bfloat16)
        pl_ = jnp.dot(pool_pad, h, preferred_element_type=jnp.float32)
        pooled = pooled + jnp.dot(pl_.astype(jnp.bfloat16), lw1s[l],
                                  preferred_element_type=jnp.float32)
    hh = jnp.maximum(pooled + lb1p, 0.0)
    logits_ref = jnp.dot(hh.astype(jnp.bfloat16), lw2p,
                         preferred_element_type=jnp.float32) + lb2p
    ref = jax.nn.log_softmax(logits_ref, axis=-1)[:num_graphs, :num_classes]
    ref = jax.block_until_ready(ref)

    assert out.shape == (num_graphs, num_classes)
    # log_softmax rows should sum to ~1 after exp (padded classes underflow to 0).
    assert jnp.allclose(jnp.sum(jnp.exp(out.astype(jnp.float32)), axis=-1), 1.0,
                        atol=1e-4)
    assert jnp.allclose(out, ref, atol=1e-1, rtol=1e-1)
    print("KERNEL_OK")
</pallas_src>

<mosaic_0001>
module attributes {stable_mosaic.version = 11 : i64} {
  func.func @kernel(%arg0: memref<32x32xbf16, #tpu.memory_space<vmem>>, %arg1: memref<32x128xbf16, #tpu.memory_space<vmem>>, %arg2: memref<8x32xbf16, #tpu.memory_space<vmem>>, %arg3: memref<3x128x128xbf16, #tpu.memory_space<vmem>>, %arg4: memref<3x1x128xf32, #tpu.memory_space<vmem>>, %arg5: memref<3x128x128xbf16, #tpu.memory_space<vmem>>, %arg6: memref<3x1x128xf32, #tpu.memory_space<vmem>>, %arg7: memref<3x128x128xbf16, #tpu.memory_space<vmem>>, %arg8: memref<1x128xf32, #tpu.memory_space<vmem>>, %arg9: memref<128x128xbf16, #tpu.memory_space<vmem>>, %arg10: memref<1x128xf32, #tpu.memory_space<vmem>>, %arg11: memref<8x128xf32, #tpu.memory_space<vmem>>) attributes {dimension_semantics = [], scalar_prefetch = 0 : i64, scratch_operands = 0 : i64, tpu.core_type = #tpu.core_type<tc>} {
    %c0 = arith.constant 0 : index
    %c0_0 = arith.constant 0 : index
    %0 = vector.load %arg0[%c0, %c0_0] : memref<32x32xbf16, #tpu.memory_space<vmem>>, vector<32x32xbf16>
    %c0_1 = arith.constant 0 : index
    %c0_2 = arith.constant 0 : index
    %1 = vector.load %arg2[%c0_1, %c0_2] : memref<8x32xbf16, #tpu.memory_space<vmem>>, vector<8x32xbf16>
    %c0_3 = arith.constant 0 : index
    %c0_4 = arith.constant 0 : index
    %2 = vector.load %arg1[%c0_3, %c0_4] : memref<32x128xbf16, #tpu.memory_space<vmem>>, vector<32x128xbf16>
    %cst = arith.constant 0.000000e+00 : f32
    %3 = vector.broadcast %cst : f32 to vector<8x128xf32>
    %c0_i32 = arith.constant 0 : i32
    %cst_5 = arith.constant dense<0.000000e+00> : vector<32x128xf32>
    %4 = tpu.matmul %0, %2, %cst_5 {dimension_numbers = #tpu.dot_dimension_numbers<[1], [0], [0], [1], [0, 0, 1, 1], [], []>} : vector<32x32xbf16>, vector<32x128xbf16>, vector<32x128xf32> -> vector<32x128xf32>
    %5 = arith.truncf %4 : vector<32x128xf32> to vector<32x128xbf16>
    %6 = arith.index_cast %c0_i32 : i32 to index
    %c0_6 = arith.constant 0 : index
    %c0_7 = arith.constant 0 : index
    %7 = vector.load %arg3[%6, %c0_6, %c0_7] : memref<3x128x128xbf16, #tpu.memory_space<vmem>>, vector<1x128x128xbf16>
    %8 = vector.shape_cast %7 : vector<1x128x128xbf16> to vector<128x128xbf16>
    %cst_8 = arith.constant dense<0.000000e+00> : vector<32x128xf32>
    %9 = tpu.matmul %5, %8, %cst_8 {dimension_numbers = #tpu.dot_dimension_numbers<[1], [0], [0], [1], [0, 0, 1, 1], [], []>} : vector<32x128xbf16>, vector<128x128xbf16>, vector<32x128xf32> -> vector<32x128xf32>
    %10 = arith.index_cast %c0_i32 : i32 to index
    %c0_9 = arith.constant 0 : index
    %c0_10 = arith.constant 0 : index
    %11 = vector.load %arg4[%10, %c0_9, %c0_10] : memref<3x1x128xf32, #tpu.memory_space<vmem>>, vector<1x1x128xf32>
    %12 = vector.shape_cast %11 : vector<1x1x128xf32> to vector<1x128xf32>
    %13 = vector.broadcast %12 : vector<1x128xf32> to vector<32x128xf32>
    %14 = arith.addf %9, %13 : vector<32x128xf32>
    %cst_11 = arith.constant 0.000000e+00 : f32
    %15 = vector.broadcast %cst_11 : f32 to vector<32x128xf32>
    %16 = arith.maximumf %14, %15 : vector<32x128xf32>
    %17 = arith.truncf %16 : vector<32x128xf32> to vector<32x128xbf16>
    %18 = arith.index_cast %c0_i32 : i32 to index
    %c0_12 = arith.constant 0 : index
    %c0_13 = arith.constant 0 : index
    %19 = vector.load %arg5[%18, %c0_12, %c0_13] : memref<3x128x128xbf16, #tpu.memory_space<vmem>>, vector<1x128x128xbf16>
    %20 = vector.shape_cast %19 : vector<1x128x128xbf16> to vector<128x128xbf16>
    %cst_14 = arith.constant dense<0.000000e+00> : vector<32x128xf32>
    %21 = tpu.matmul %17, %20, %cst_14 {dimension_numbers = #tpu.dot_dimension_numbers<[1], [0], [0], [1], [0, 0, 1, 1], [], []>} : vector<32x128xbf16>, vector<128x128xbf16>, vector<32x128xf32> -> vector<32x128xf32>
    %22 = arith.index_cast %c0_i32 : i32 to index
    %c0_15 = arith.constant 0 : index
    %c0_16 = arith.constant 0 : index
    %23 = vector.load %arg6[%22, %c0_15, %c0_16] : memref<3x1x128xf32, #tpu.memory_space<vmem>>, vector<1x1x128xf32>
    %24 = vector.shape_cast %23 : vector<1x1x128xf32> to vector<1x128xf32>
    %25 = vector.broadcast %24 : vector<1x128xf32> to vector<32x128xf32>
    %26 = arith.addf %21, %25 : vector<32x128xf32>
    %cst_17 = arith.constant 0.000000e+00 : f32
    %27 = vector.broadcast %cst_17 : f32 to vector<32x128xf32>
    %28 = arith.maximumf %26, %27 : vector<32x128xf32>
    %29 = arith.truncf %28 : vector<32x128xf32> to vector<32x128xbf16>
    %cst_18 = arith.constant dense<0.000000e+00> : vector<8x128xf32>
    %30 = tpu.matmul %1, %29, %cst_18 {dimension_numbers = #tpu.dot_dimension_numbers<[1], [0], [0], [1], [0, 0, 1, 1], [], []>} : vector<8x32xbf16>, vector<32x128xbf16>, vector<8x128xf32> -> vector<8x128xf32>
    %31 = arith.truncf %30 : vector<8x128xf32> to vector<8x128xbf16>
    %32 = arith.index_cast %c0_i32 : i32 to index
    %c0_19 = arith.constant 0 : index
    %c0_20 = arith.constant 0 : index
    %33 = vector.load %arg7[%32, %c0_19, %c0_20] : memref<3x128x128xbf16, #tpu.memory_space<vmem>>, vector<1x128x128xbf16>
    %34 = vector.shape_cast %33 : vector<1x128x128xbf16> to vector<128x128xbf16>
    %cst_21 = arith.constant dense<0.000000e+00> : vector<8x128xf32>
    %35 = tpu.matmul %31, %34, %cst_21 {dimension_numbers = #tpu.dot_dimension_numbers<[1], [0], [0], [1], [0, 0, 1, 1], [], []>} : vector<8x128xbf16>, vector<128x128xbf16>, vector<8x128xf32> -> vector<8x128xf32>
    %36 = arith.addf %3, %35 : vector<8x128xf32>
    %c1_i32 = arith.constant 1 : i32
    %cst_22 = arith.constant dense<0.000000e+00> : vector<32x128xf32>
    %37 = tpu.matmul %0, %29, %cst_22 {dimension_numbers = #tpu.dot_dimension_numbers<[1], [0], [0], [1], [0, 0, 1, 1], [], []>} : vector<32x32xbf16>, vector<32x128xbf16>, vector<32x128xf32> -> vector<32x128xf32>
    %38 = arith.truncf %37 : vector<32x128xf32> to vector<32x128xbf16>
    %39 = arith.index_cast %c1_i32 : i32 to index
    %c0_23 = arith.constant 0 : index
    %c0_24 = arith.constant 0 : index
    %40 = vector.load %arg3[%39, %c0_23, %c0_24] : memref<3x128x128xbf16, #tpu.memory_space<vmem>>, vector<1x128x128xbf16>
    %41 = vector.shape_cast %40 : vector<1x128x128xbf16> to vector<128x128xbf16>
    %cst_25 = arith.constant dense<0.000000e+00> : vector<32x128xf32>
    %42 = tpu.matmul %38, %41, %cst_25 {dimension_numbers = #tpu.dot_dimension_numbers<[1], [0], [0], [1], [0, 0, 1, 1], [], []>} : vector<32x128xbf16>, vector<128x128xbf16>, vector<32x128xf32> -> vector<32x128xf32>
    %43 = arith.index_cast %c1_i32 : i32 to index
    %c0_26 = arith.constant 0 : index
    %c0_27 = arith.constant 0 : index
    %44 = vector.load %arg4[%43, %c0_26, %c0_27] : memref<3x1x128xf32, #tpu.memory_space<vmem>>, vector<1x1x128xf32>
    %45 = vector.shape_cast %44 : vector<1x1x128xf32> to vector<1x128xf32>
    %46 = vector.broadcast %45 : vector<1x128xf32> to vector<32x128xf32>
    %47 = arith.addf %42, %46 : vector<32x128xf32>
    %cst_28 = arith.constant 0.000000e+00 : f32
    %48 = vector.broadcast %cst_28 : f32 to vector<32x128xf32>
    %49 = arith.maximumf %47, %48 : vector<32x128xf32>
    %50 = arith.truncf %49 : vector<32x128xf32> to vector<32x128xbf16>
    %51 = arith.index_cast %c1_i32 : i32 to index
    %c0_29 = arith.constant 0 : index
    %c0_30 = arith.constant 0 : index
    %52 = vector.load %arg5[%51, %c0_29, %c0_30] : memref<3x128x128xbf16, #tpu.memory_space<vmem>>, vector<1x128x128xbf16>
    %53 = vector.shape_cast %52 : vector<1x128x128xbf16> to vector<128x128xbf16>
    %cst_31 = arith.constant dense<0.000000e+00> : vector<32x128xf32>
    %54 = tpu.matmul %50, %53, %cst_31 {dimension_numbers = #tpu.dot_dimension_numbers<[1], [0], [0], [1], [0, 0, 1, 1], [], []>} : vector<32x128xbf16>, vector<128x128xbf16>, vector<32x128xf32> -> vector<32x128xf32>
    %55 = arith.index_cast %c1_i32 : i32 to index
    %c0_32 = arith.constant 0 : index
    %c0_33 = arith.constant 0 : index
    %56 = vector.load %arg6[%55, %c0_32, %c0_33] : memref<3x1x128xf32, #tpu.memory_space<vmem>>, vector<1x1x128xf32>
    %57 = vector.shape_cast %56 : vector<1x1x128xf32> to vector<1x128xf32>
    %58 = vector.broadcast %57 : vector<1x128xf32> to vector<32x128xf32>
    %59 = arith.addf %54, %58 : vector<32x128xf32>
    %cst_34 = arith.constant 0.000000e+00 : f32
    %60 = vector.broadcast %cst_34 : f32 to vector<32x128xf32>
    %61 = arith.maximumf %59, %60 : vector<32x128xf32>
    %62 = arith.truncf %61 : vector<32x128xf32> to vector<32x128xbf16>
    %cst_35 = arith.constant dense<0.000000e+00> : vector<8x128xf32>
    %63 = tpu.matmul %1, %62, %cst_35 {dimension_numbers = #tpu.dot_dimension_numbers<[1], [0], [0], [1], [0, 0, 1, 1], [], []>} : vector<8x32xbf16>, vector<32x128xbf16>, vector<8x128xf32> -> vector<8x128xf32>
    %64 = arith.truncf %63 : vector<8x128xf32> to vector<8x128xbf16>
    %65 = arith.index_cast %c1_i32 : i32 to index
    %c0_36 = arith.constant 0 : index
    %c0_37 = arith.constant 0 : index
    %66 = vector.load %arg7[%65, %c0_36, %c0_37] : memref<3x128x128xbf16, #tpu.memory_space<vmem>>, vector<1x128x128xbf16>
    %67 = vector.shape_cast %66 : vector<1x128x128xbf16> to vector<128x128xbf16>
    %cst_38 = arith.constant dense<0.000000e+00> : vector<8x128xf32>
    %68 = tpu.matmul %64, %67, %cst_38 {dimension_numbers = #tpu.dot_dimension_numbers<[1], [0], [0], [1], [0, 0, 1, 1], [], []>} : vector<8x128xbf16>, vector<128x128xbf16>, vector<8x128xf32> -> vector<8x128xf32>
    %69 = arith.addf %36, %68 : vector<8x128xf32>
    %c2_i32 = arith.constant 2 : i32
    %cst_39 = arith.constant dense<0.000000e+00> : vector<32x128xf32>
    %70 = tpu.matmul %0, %62, %cst_39 {dimension_numbers = #tpu.dot_dimension_numbers<[1], [0], [0], [1], [0, 0, 1, 1], [], []>} : vector<32x32xbf16>, vector<32x128xbf16>, vector<32x128xf32> -> vector<32x128xf32>
    %71 = arith.truncf %70 : vector<32x128xf32> to vector<32x128xbf16>
    %72 = arith.index_cast %c2_i32 : i32 to index
    %c0_40 = arith.constant 0 : index
    %c0_41 = arith.constant 0 : index
    %73 = vector.load %arg3[%72, %c0_40, %c0_41] : memref<3x128x128xbf16, #tpu.memory_space<vmem>>, vector<1x128x128xbf16>
    %74 = vector.shape_cast %73 : vector<1x128x128xbf16> to vector<128x128xbf16>
    %cst_42 = arith.constant dense<0.000000e+00> : vector<32x128xf32>
    %75 = tpu.matmul %71, %74, %cst_42 {dimension_numbers = #tpu.dot_dimension_numbers<[1], [0], [0], [1], [0, 0, 1, 1], [], []>} : vector<32x128xbf16>, vector<128x128xbf16>, vector<32x128xf32> -> vector<32x128xf32>
    %76 = arith.index_cast %c2_i32 : i32 to index
    %c0_43 = arith.constant 0 : index
    %c0_44 = arith.constant 0 : index
    %77 = vector.load %arg4[%76, %c0_43, %c0_44] : memref<3x1x128xf32, #tpu.memory_space<vmem>>, vector<1x1x128xf32>
    %78 = vector.shape_cast %77 : vector<1x1x128xf32> to vector<1x128xf32>
    %79 = vector.broadcast %78 : vector<1x128xf32> to vector<32x128xf32>
    %80 = arith.addf %75, %79 : vector<32x128xf32>
    %cst_45 = arith.constant 0.000000e+00 : f32
    %81 = vector.broadcast %cst_45 : f32 to vector<32x128xf32>
    %82 = arith.maximumf %80, %81 : vector<32x128xf32>
    %83 = arith.truncf %82 : vector<32x128xf32> to vector<32x128xbf16>
    %84 = arith.index_cast %c2_i32 : i32 to index
    %c0_46 = arith.constant 0 : index
    %c0_47 = arith.constant 0 : index
    %85 = vector.load %arg5[%84, %c0_46, %c0_47] : memref<3x128x128xbf16, #tpu.memory_space<vmem>>, vector<1x128x128xbf16>
    %86 = vector.shape_cast %85 : vector<1x128x128xbf16> to vector<128x128xbf16>
    %cst_48 = arith.constant dense<0.000000e+00> : vector<32x128xf32>
    %87 = tpu.matmul %83, %86, %cst_48 {dimension_numbers = #tpu.dot_dimension_numbers<[1], [0], [0], [1], [0, 0, 1, 1], [], []>} : vector<32x128xbf16>, vector<128x128xbf16>, vector<32x128xf32> -> vector<32x128xf32>
    %88 = arith.index_cast %c2_i32 : i32 to index
    %c0_49 = arith.constant 0 : index
    %c0_50 = arith.constant 0 : index
    %89 = vector.load %arg6[%88, %c0_49, %c0_50] : memref<3x1x128xf32, #tpu.memory_space<vmem>>, vector<1x1x128xf32>
    %90 = vector.shape_cast %89 : vector<1x1x128xf32> to vector<1x128xf32>
    %91 = vector.broadcast %90 : vector<1x128xf32> to vector<32x128xf32>
    %92 = arith.addf %87, %91 : vector<32x128xf32>
    %cst_51 = arith.constant 0.000000e+00 : f32
    %93 = vector.broadcast %cst_51 : f32 to vector<32x128xf32>
    %94 = arith.maximumf %92, %93 : vector<32x128xf32>
    %95 = arith.truncf %94 : vector<32x128xf32> to vector<32x128xbf16>
    %cst_52 = arith.constant dense<0.000000e+00> : vector<8x128xf32>
    %96 = tpu.matmul %1, %95, %cst_52 {dimension_numbers = #tpu.dot_dimension_numbers<[1], [0], [0], [1], [0, 0, 1, 1], [], []>} : vector<8x32xbf16>, vector<32x128xbf16>, vector<8x128xf32> -> vector<8x128xf32>
    %97 = arith.truncf %96 : vector<8x128xf32> to vector<8x128xbf16>
    %98 = arith.index_cast %c2_i32 : i32 to index
    %c0_53 = arith.constant 0 : index
    %c0_54 = arith.constant 0 : index
    %99 = vector.load %arg7[%98, %c0_53, %c0_54] : memref<3x128x128xbf16, #tpu.memory_space<vmem>>, vector<1x128x128xbf16>
    %100 = vector.shape_cast %99 : vector<1x128x128xbf16> to vector<128x128xbf16>
    %cst_55 = arith.constant dense<0.000000e+00> : vector<8x128xf32>
    %101 = tpu.matmul %97, %100, %cst_55 {dimension_numbers = #tpu.dot_dimension_numbers<[1], [0], [0], [1], [0, 0, 1, 1], [], []>} : vector<8x128xbf16>, vector<128x128xbf16>, vector<8x128xf32> -> vector<8x128xf32>
    %102 = arith.addf %69, %101 : vector<8x128xf32>
    %c3_i32 = arith.constant 3 : i32
    %c0_56 = arith.constant 0 : index
    %c0_57 = arith.constant 0 : index
    %103 = vector.load %arg8[%c0_56, %c0_57] : memref<1x128xf32, #tpu.memory_space<vmem>>, vector<1x128xf32>
    %104 = vector.broadcast %103 : vector<1x128xf32> to vector<8x128xf32>
    %105 = arith.addf %102, %104 : vector<8x128xf32>
    %cst_58 = arith.constant 0.000000e+00 : f32
    %106 = vector.broadcast %cst_58 : f32 to vector<8x128xf32>
    %107 = arith.maximumf %105, %106 : vector<8x128xf32>
    %108 = arith.truncf %107 : vector<8x128xf32> to vector<8x128xbf16>
    %c0_59 = arith.constant 0 : index
    %c0_60 = arith.constant 0 : index
    %109 = vector.load %arg9[%c0_59, %c0_60] : memref<128x128xbf16, #tpu.memory_space<vmem>>, vector<128x128xbf16>
    %cst_61 = arith.constant dense<0.000000e+00> : vector<8x128xf32>
    %110 = tpu.matmul %108, %109, %cst_61 {dimension_numbers = #tpu.dot_dimension_numbers<[1], [0], [0], [1], [0, 0, 1, 1], [], []>} : vector<8x128xbf16>, vector<128x128xbf16>, vector<8x128xf32> -> vector<8x128xf32>
    %c0_62 = arith.constant 0 : index
    %c0_63 = arith.constant 0 : index
    %111 = vector.load %arg10[%c0_62, %c0_63] : memref<1x128xf32, #tpu.memory_space<vmem>>, vector<1x128xf32>
    %112 = vector.broadcast %111 : vector<1x128xf32> to vector<8x128xf32>
    %113 = arith.addf %110, %112 : vector<8x128xf32>
    %cst_64 = arith.constant dense<0xFF800000> : vector<8xf32>
    %114 = vector.multi_reduction <maximumf>, %113, %cst_64 [1] : vector<8x128xf32> to vector<8xf32>
    %115 = vector.shape_cast %114 : vector<8xf32> to vector<8x1xf32>
    %116 = vector.broadcast %115 : vector<8x1xf32> to vector<8x128xf32>
    %117 = arith.subf %113, %116 : vector<8x128xf32>
    %118 = math.exp %117 : vector<8x128xf32>
    %cst_65 = arith.constant dense<0.000000e+00> : vector<8xf32>
    %119 = vector.multi_reduction <add>, %118, %cst_65 [1] : vector<8x128xf32> to vector<8xf32>
    %120 = vector.shape_cast %119 : vector<8xf32> to vector<8x1xf32>
    %121 = math.log %120 : vector<8x1xf32>
    %122 = arith.addf %121, %115 : vector<8x1xf32>
    %123 = vector.broadcast %122 : vector<8x1xf32> to vector<8x128xf32>
    %124 = arith.subf %113, %123 : vector<8x128xf32>
    %c0_66 = arith.constant 0 : index
    %c0_67 = arith.constant 0 : index
    %125 = vector.load %arg11[%c0_66, %c0_67] : memref<8x128xf32, #tpu.memory_space<vmem>>, vector<8x128xf32>
    tpu.vector_store %arg11[%c0_66, %c0_67], %124 {strides = array<i32>} : memref<8x128xf32, #tpu.memory_space<vmem>>, vector<8x128xf32>,
    return
  }
}

</mosaic_0001>

<llo_original>
// kernel: gin0_forward.1
$region0: #{gin0_forward.1}
  #allocation0 [shape = 'u32[]', space=smem, size = 0x4, offset = 0x4, fixed_abs, tag = 'smem constant byte address 0x4 - core index']
  #allocation1 [shape = 'u32[144,128]{1,0:T(1,128)}', space=vmem, size = 0x12000, scoped, tag = 'internal scratch']
  %s0 = inlined_call_operand.hbm [shape: bf16[32,32], index: 0, kind: input, shape index: {}]
  %s1 = inlined_call_operand.hbm [shape: bf16[32,128], index: 1, kind: input, shape index: {}]
  %s2 = inlined_call_operand.hbm [shape: bf16[8,32], index: 2, kind: input, shape index: {}]
  %s3 = inlined_call_operand.hbm [shape: bf16[3,128,128], index: 3, kind: input, shape index: {}]
  %s4 = inlined_call_operand.vmem [shape: f32[3,1,128], index: 4, kind: input, shape index: {}]
  %s5 = inlined_call_operand.hbm [shape: bf16[3,128,128], index: 5, kind: input, shape index: {}]
  %s6 = inlined_call_operand.vmem [shape: f32[3,1,128], index: 6, kind: input, shape index: {}]
  %s7 = inlined_call_operand.hbm [shape: bf16[3,128,128], index: 7, kind: input, shape index: {}]
  %s8 = inlined_call_operand.vmem [shape: f32[1,128], index: 8, kind: input, shape index: {}]
  %s9 = inlined_call_operand.hbm [shape: bf16[128,128], index: 9, kind: input, shape index: {}]
  %s10 = inlined_call_operand.vmem [shape: f32[1,128], index: 10, kind: input, shape index: {}]
  %s11 = inlined_call_operand.vmem [shape: f32[8,128], index: 11, kind: output, shape index: {}]
  %s12 = sld [smem:[#allocation0]]
  $region82: #{gin0_forward.1} parent=0
    _
  %s14 = ssub.s32 1, %s12
  %s15 = scalar_select 0, %s14, %s12
  $region1: #{gin0_forward.1} parent=0
    #allocation2 [shape = 'u8[8192]{0}', space=vmem, size = 0x2000, scoped, tag = 'input window, operand 0, single buffered']
    #allocation3 [shape = 's32[1]{0}', space=sflag, size = 0x4, scoped, tag = 'scoped memory for gin0_forward.1']
    #allocation4 [shape = 'u8[8192]{0}', space=vmem, size = 0x2000, scoped, tag = 'input window, operand 1, single buffered']
    #allocation5 [shape = 's32[1]{0}', space=sflag, size = 0x4, scoped, tag = 'scoped memory for gin0_forward.1']
    #allocation6 [shape = 'u8[2048]{0}', space=vmem, size = 0x800, scoped, tag = 'input window, operand 2, single buffered']
    #allocation7 [shape = 'u8[98304]{0}', space=vmem, size = 0x18000, scoped, tag = 'input window, operand 3, single buffered']
    #allocation8 [shape = 's32[1]{0}', space=sflag, size = 0x4, scoped, tag = 'scoped memory for gin0_forward.1']
    #allocation9 [shape = 'u8[98304]{0}', space=vmem, size = 0x18000, scoped, tag = 'input window, operand 5, single buffered']
    #allocation10 [shape = 'u8[98304]{0}', space=vmem, size = 0x18000, scoped, tag = 'input window, operand 7, single buffered']
    #allocation11 [shape = 's32[1]{0}', space=sflag, size = 0x4, scoped, tag = 'scoped memory for gin0_forward.1']
    #allocation12 [shape = 'u8[32768]{0}', space=vmem, size = 0x8000, scoped, tag = 'input window, operand 9, single buffered']
    %16 = vsyncpa [#allocation3], 0
    %17 = vsyncpa [#allocation5], 0
    %18 = vsyncpa [#allocation8], 0
    %19 = vsyncpa [#allocation11], 0
    // Predicated region
    $region2: #{gin0_forward.1} parent=1 // pred_check
      _
    $region3: #{gin0_forward.1} parent=1 // pred_check_branch
      %21 = sbr.rel (0) target = $region5
    $region4: #{gin0_forward.1} parent=1 // pred_region
      %s23 = ssub.s32 256, 256
      %24 = vsyncadd [#allocation3], %s23
      %s25 = sshll.u32 [#allocation2], 4
      %s26 = int_to_ptr.vmem [resolvable:$true] %s25
      %31 = dma.hbm_to_vmem [thread:$0]  %s0, 256, %s26, [#allocation3], 64, 64, 4
    $region5: #{gin0_forward.1} parent=1 // pred_fallthru
      _
    // Predicated region
    $region6: #{gin0_forward.1} parent=1 // pred_check
      _
    $region7: #{gin0_forward.1} parent=1 // pred_check_branch
      %33 = sbr.rel (0) target = $region9
    $region8: #{gin0_forward.1} parent=1 // pred_region
      %s35 = ssub.s32 256, 256
      %36 = vsyncadd [#allocation5], %s35
      %s37 = sshll.u32 [#allocation4], 4
      %s38 = int_to_ptr.vmem [resolvable:$true] %s37
      %43 = dma.hbm_to_vmem [thread:$0]  %s1, 256, %s38, [#allocation5], 64, 64, 4
    $region9: #{gin0_forward.1} parent=1 // pred_fallthru
      _
    // Predicated region
    $region10: #{gin0_forward.1} parent=1 // pred_check
      _
    $region11: #{gin0_forward.1} parent=1 // pred_check_branch
      %45 = sbr.rel (0) target = $region13
    $region12: #{gin0_forward.1} parent=1 // pred_region
      %s47 = ssub.s32 64, 64
      %48 = vsyncadd [#allocation5], %s47
      %s50 = sshll.u32 [#allocation6], 4
      %s51 = int_to_ptr.vmem [resolvable:$true] %s50
      %53 = dma.hbm_to_vmem [thread:$0]  %s2, 64, %s51, [#allocation5]
    $region13: #{gin0_forward.1} parent=1 // pred_fallthru
      _
    // Predicated region
    $region14: #{gin0_forward.1} parent=1 // pred_check
      _
    $region15: #{gin0_forward.1} parent=1 // pred_check_branch
      %55 = sbr.rel (0) target = $region17
    $region16: #{gin0_forward.1} parent=1 // pred_region
      %s57 = ssub.s32 3072, 3072
      %58 = vsyncadd [#allocation8], %s57
      %s59 = sshll.u32 [#allocation7], 4
      %s60 = int_to_ptr.vmem [resolvable:$true] %s59
      %65 = dma.hbm_to_vmem [thread:$0]  %s3, 3072, %s60, [#allocation8], 64, 64, 4
    $region17: #{gin0_forward.1} parent=1 // pred_fallthru
      _
    // Predicated region
    $region18: #{gin0_forward.1} parent=1 // pred_check
      _
    $region19: #{gin0_forward.1} parent=1 // pred_check_branch
      %67 = sbr.rel (0) target = $region21
    $region20: #{gin0_forward.1} parent=1 // pred_region
      _
    $region21: #{gin0_forward.1} parent=1 // pred_fallthru
      _
    // Predicated region
    $region22: #{gin0_forward.1} parent=1 // pred_check
      _
    $region23: #{gin0_forward.1} parent=1 // pred_check_branch
      %69 = sbr.rel (0) target = $region25
    $region24: #{gin0_forward.1} parent=1 // pred_region
      %s71 = ssub.s32 3072, 3072
      %72 = vsyncadd [#allocation8], %s71
      %s73 = sshll.u32 [#allocation9], 4
      %s74 = int_to_ptr.vmem [resolvable:$true] %s73
      %79 = dma.hbm_to_vmem [thread:$0]  %s5, 3072, %s74, [#allocation8], 64, 64, 4
    $region25: #{gin0_forward.1} parent=1 // pred_fallthru
      _
    // Predicated region
    $region26: #{gin0_forward.1} parent=1 // pred_check
      _
    $region27: #{gin0_forward.1} parent=1 // pred_check_branch
      %81 = sbr.rel (0) target = $region29
    $region28: #{gin0_forward.1} parent=1 // pred_region
      _
    $region29: #{gin0_forward.1} parent=1 // pred_fallthru
      _
    // Predicated region
    $region30: #{gin0_forward.1} parent=1 // pred_check
      _
    $region31: #{gin0_forward.1} parent=1 // pred_check_branch
      %83 = sbr.rel (0) target = $region33
    $region32: #{gin0_forward.1} parent=1 // pred_region
      %s85 = ssub.s32 3072, 3072
      %86 = vsyncadd [#allocation11], %s85
      %s87 = sshll.u32 [#allocation10], 4
      %s88 = int_to_ptr.vmem [resolvable:$true] %s87
      %93 = dma.hbm_to_vmem [thread:$0]  %s7, 3072, %s88, [#allocation11], 64, 64, 4
    $region33: #{gin0_forward.1} parent=1 // pred_fallthru
      _
    // Predicated region
    $region34: #{gin0_forward.1} parent=1 // pred_check
      _
    $region35: #{gin0_forward.1} parent=1 // pred_check_branch
      %95 = sbr.rel (0) target = $region37
    $region36: #{gin0_forward.1} parent=1 // pred_region
      _
    $region37: #{gin0_forward.1} parent=1 // pred_fallthru
      _
    // Predicated region
    $region38: #{gin0_forward.1} parent=1 // pred_check
      _
    $region39: #{gin0_forward.1} parent=1 // pred_check_branch
      %97 = sbr.rel (0) target = $region41
    $region40: #{gin0_forward.1} parent=1 // pred_region
      %s99 = ssub.s32 1024, 1024
      %100 = vsyncadd [#allocation11], %s99
      %s101 = sshll.u32 [#allocation12], 4
      %s102 = int_to_ptr.vmem [resolvable:$true] %s101
      %107 = dma.hbm_to_vmem [thread:$0]  %s9, 1024, %s102, [#allocation11], 64, 64, 4
    $region41: #{gin0_forward.1} parent=1 // pred_fallthru
      _
    // Predicated region
    $region42: #{gin0_forward.1} parent=1 // pred_check
      _
    $region43: #{gin0_forward.1} parent=1 // pred_check_branch
      %109 = sbr.rel (0) target = $region45
    $region44: #{gin0_forward.1} parent=1 // pred_region
      _
    $region45: #{gin0_forward.1} parent=1 // pred_fallthru
      _
    // Predicated region
    $region46: #{gin0_forward.1} parent=1 // pred_check
      _
    $region47: #{gin0_forward.1} parent=1 // pred_check_branch
      %111 = sbr.rel (0) target = $region49
    $region48: #{gin0_forward.1} parent=1 // pred_region
      %112 = dma.done [#allocation3], 256
    $region49: #{gin0_forward.1} parent=1 // pred_fallthru
      _
    // Predicated region
    $region50: #{gin0_forward.1} parent=1 // pred_check
      _
    $region51: #{gin0_forward.1} parent=1 // pred_check_branch
      %114 = sbr.rel (0) target = $region53
    $region52: #{gin0_forward.1} parent=1 // pred_region
      %115 = dma.done [#allocation5], 256
    $region53: #{gin0_forward.1} parent=1 // pred_fallthru
      _
    // Predicated region
    $region54: #{gin0_forward.1} parent=1 // pred_check
      _
    $region55: #{gin0_forward.1} parent=1 // pred_check_branch
      %117 = sbr.rel (0) target = $region57
    $region56: #{gin0_forward.1} parent=1 // pred_region
      %118 = dma.done [#allocation5], 64
    $region57: #{gin0_forward.1} parent=1 // pred_fallthru
      _
    // Predicated region
    $region58: #{gin0_forward.1} parent=1 // pred_check
      _
    $region59: #{gin0_forward.1} parent=1 // pred_check_branch
      %120 = sbr.rel (0) target = $region61
    $region60: #{gin0_forward.1} parent=1 // pred_region
      %121 = dma.done [#allocation8], 3072
    $region61: #{gin0_forward.1} parent=1 // pred_fallthru
      _
    // Predicated region
    $region62: #{gin0_forward.1} parent=1 // pred_check
      _
    $region63: #{gin0_forward.1} parent=1 // pred_check_branch
      %123 = sbr.rel (0) target = $region65
    $region64: #{gin0_forward.1} parent=1 // pred_region
      %124 = dma.done [#allocation8], 3072
    $region65: #{gin0_forward.1} parent=1 // pred_fallthru
      _
    // Predicated region
    $region66: #{gin0_forward.1} parent=1 // pred_check
      _
    $region67: #{gin0_forward.1} parent=1 // pred_check_branch
      %126 = sbr.rel (0) target = $region69
    $region68: #{gin0_forward.1} parent=1 // pred_region
      %127 = dma.done [#allocation11], 3072
    $region69: #{gin0_forward.1} parent=1 // pred_fallthru
      _
    // Predicated region
    $region70: #{gin0_forward.1} parent=1 // pred_check
      _
    $region71: #{gin0_forward.1} parent=1 // pred_check_branch
      %129 = sbr.rel (0) target = $region73
    $region72: #{gin0_forward.1} parent=1 // pred_region
      %130 = dma.done [#allocation11], 1024
    $region73: #{gin0_forward.1} parent=1 // pred_fallthru
      _
    %v132 = vld [vmem:[#allocation2] sm:$0xf]
    %v133 = vld [vmem:[#allocation2 + $0x4] sm:$0xf]
    %v134 = vld [vmem:[#allocation2 + $0x8] sm:$0xf]
    %v135 = vld [vmem:[#allocation2 + $0xc] sm:$0xf]
    %v136 = vld [vmem:[#allocation6] sm:$0xf]
    %v137 = vld [vmem:[#allocation4] sm:$0xf]
    %v138 = vld [vmem:[#allocation4 + $0x4] sm:$0xf]
    %v139 = vld [vmem:[#allocation4 + $0x8] sm:$0xf]
    %v140 = vld [vmem:[#allocation4 + $0xc] sm:$0xf]
    %v145 = vunpack.c.l.b16 %v132
    %v146 = vunpack.c.l.b16 %v133
    %v147 = vunpack.c.l.b16 %v134
    %v148 = vunpack.c.l.b16 %v135
    %v149 = vpack.c.b16 %v146, %v145
    %v150 = vpack.c.b16 %v148, %v147
    %v155 = vunpack.c.l.b16 %v137
    %v156 = vunpack.c.l.b16 %v138
    %v157 = vunpack.c.l.b16 %v139
    %v158 = vunpack.c.l.b16 %v140
    %v159 = vpack.c.b16 %v156, %v155
    %v160 = vpack.c.b16 %v158, %v157
    %vm163 = vcmask 261120
    %v165 = vsel %vm163, %v149, 0
    %v168 = vsel %vm163, %v150, 0
    %170 = vmatprep.subr.bf16.mxu0 0
    %171 = vmatpush1.bf16.msra.mxu0 0
    %172 = vmatprep.subr.bf16.mxu0 0
    %173 = vmatpush1.bf16.msra.mxu0 0
    %174 = vmatprep.subr.bf16.mxu0 0
    %175 = vmatpush1.bf16.msra.mxu0 0
    %176 = vmatprep.subr.bf16.mxu0 0
    %177 = vmatpush1.bf16.msra.mxu0 0
    %178 = vmatprep.subr.bf16.mxu0 0
    %179 = vmatpush1.bf16.msra.mxu0 0
    %180 = vmatprep.subr.bf16.mxu0 0
    %181 = vmatpush1.bf16.msra.mxu0 0
    %182 = vmatprep.subr.bf16.mxu0 0
    %183 = vmatpush1.bf16.msra.mxu0 %v160
    %184 = vmatprep.subr.bf16.mxu0 0
    %185 = vmatpush1.bf16.msra.mxu0 %v159
    %186 = vmatprep.subr.bf16.mxu0 0
    %187 = vmatpush2.bf16.msra.mxu0 0
    %188 = vmatprep.subr.bf16.mxu0 0
    %189 = vmatpush2.bf16.msra.mxu0 0
    %190 = vmatprep.subr.bf16.mxu0 0
    %191 = vmatpush2.bf16.msra.mxu0 0
    %192 = vmatprep.subr.bf16.mxu0 0
    %193 = vmatpush2.bf16.msra.mxu0 0
    %194 = vmatprep.subr.bf16.mxu0 0
    %195 = vmatpush2.bf16.msra.mxu0 0
    %196 = vmatprep.subr.bf16.mxu0 0
    %197 = vmatpush2.bf16.msra.mxu0 0
    %198 = vmatprep.subr.bf16.mxu0 0
    %199 = vmatpush2.bf16.msra.mxu0 0
    %200 = vmatprep.subr.bf16.mxu0 0
    %201 = vmatpush2.bf16.msra.mxu0 0
    %202 = vmatprep.mubr.bf16.mxu0 0
    %203 = vmatmul.mubr.bf16.gmra.mxu0 %v165
    %v204 = vpop.f32.mrf.mxu0
    %v205 = vadd.f32 0.0, %v204
    %v206 = vpop.f32.mrf.mxu0
    %v207 = vpop.f32.mrf.mxu0
    %v208 = vadd.f32 0.0, %v207
    %v209 = vpop.f32.mrf.mxu0
    %210 = vmatprep.mubr.bf16.mxu0 0
    %211 = vmatmul.mubr.bf16.gmra.mxu0 %v168
    %v212 = vpop.f32.mrf.mxu0
    %v213 = vadd.f32 0.0, %v212
    %v214 = vpop.f32.mrf.mxu0
    %v215 = vpop.f32.mrf.mxu0
    %v216 = vadd.f32 0.0, %v215
    %v217 = vpop.f32.mrf.mxu0
    %218 = vdwg.mxu0
    %v219 = vpack.c.bf16 %v208, %v205
    %v220 = vpack.c.bf16 %v216, %v213
    %v221 = vld [vmem:[#allocation7] sm:$0xf]
    %v222 = vld [vmem:[#allocation7 + $0x4] sm:$0xf]
    %v223 = vld [vmem:[#allocation7 + $0x8] sm:$0xf]
    %v224 = vld [vmem:[#allocation7 + $0xc] sm:$0xf]
    %v225 = vld [vmem:[#allocation7 + $0x10] sm:$0xf]
    %v226 = vld [vmem:[#allocation7 + $0x14] sm:$0xf]
    %v227 = vld [vmem:[#allocation7 + $0x18] sm:$0xf]
    %v228 = vld [vmem:[#allocation7 + $0x1c] sm:$0xf]
    %v229 = vld [vmem:[#allocation7 + $0x20] sm:$0xf]
    %v230 = vld [vmem:[#allocation7 + $0x24] sm:$0xf]
    %v231 = vld [vmem:[#allocation7 + $0x28] sm:$0xf]
    %v232 = vld [vmem:[#allocation7 + $0x2c] sm:$0xf]
    %v233 = vld [vmem:[#allocation7 + $0x30] sm:$0xf]
    %v234 = vld [vmem:[#allocation7 + $0x34] sm:$0xf]
    %v235 = vld [vmem:[#allocation7 + $0x38] sm:$0xf]
    %v236 = vld [vmem:[#allocation7 + $0x3c] sm:$0xf]
    %v237 = vld [vmem:[%s4] sm:$0x1]
    %v239 = vlaneseq
    %v240 = vshrl.u32 %v239, 7
    %v241 = vsub.s32 0, %v240
    %v242 = vrot.slane %v237, %v241
    %v260 = vunpack.c.l.b16 %v221
    %v261 = vunpack.c.l.b16 %v222
    %v262 = vunpack.c.l.b16 %v223
    %v263 = vunpack.c.l.b16 %v224
    %v264 = vunpack.c.l.b16 %v225
    %v265 = vunpack.c.l.b16 %v226
    %v266 = vunpack.c.l.b16 %v227
    %v267 = vunpack.c.l.b16 %v228
    %v268 = vunpack.c.l.b16 %v229
    %v269 = vunpack.c.l.b16 %v230
    %v270 = vunpack.c.l.b16 %v231
    %v271 = vunpack.c.l.b16 %v232
    %v272 = vunpack.c.l.b16 %v233
    %v273 = vunpack.c.l.b16 %v234
    %v274 = vunpack.c.l.b16 %v235
    %v275 = vunpack.c.l.b16 %v236
    %v276 = vpack.c.b16 %v261, %v260
    %v277 = vpack.c.b16 %v263, %v262
    %v278 = vpack.c.b16 %v265, %v264
    %v279 = vpack.c.b16 %v267, %v266
    %v280 = vpack.c.b16 %v269, %v268
    %v281 = vpack.c.b16 %v271, %v270
    %v282 = vpack.c.b16 %v273, %v272
    %v283 = vpack.c.b16 %v275, %v274
    %292 = vmatprep.subr.bf16.mxu0 0
    %293 = vmatpush1.bf16.msra.mxu0 %v283
    %294 = vmatprep.subr.bf16.mxu0 0
    %295 = vmatpush1.bf16.msra.mxu0 %v282
    %296 = vmatprep.subr.bf16.mxu0 0
    %297 = vmatpush1.bf16.msra.mxu0 %v281
    %298 = vmatprep.subr.bf16.mxu0 0
    %299 = vmatpush1.bf16.msra.mxu0 %v280
    %300 = vmatprep.subr.bf16.mxu0 0
    %301 = vmatpush1.bf16.msra.mxu0 %v279
    %302 = vmatprep.subr.bf16.mxu0 0
    %303 = vmatpush1.bf16.msra.mxu0 %v278
    %304 = vmatprep.subr.bf16.mxu0 0
    %305 = vmatpush1.bf16.msra.mxu0 %v277
    %306 = vmatprep.subr.bf16.mxu0 0
    %307 = vmatpush1.bf16.msra.mxu0 %v276
    %308 = vmatprep.subr.bf16.mxu0 0
    %309 = vmatpush2.bf16.msra.mxu0 0
    %310 = vmatprep.subr.bf16.mxu0 0
    %311 = vmatpush2.bf16.msra.mxu0 0
    %312 = vmatprep.subr.bf16.mxu0 0
    %313 = vmatpush2.bf16.msra.mxu0 0
    %314 = vmatprep.subr.bf16.mxu0 0
    %315 = vmatpush2.bf16.msra.mxu0 0
    %316 = vmatprep.subr.bf16.mxu0 0
    %317 = vmatpush2.bf16.msra.mxu0 0
    %318 = vmatprep.subr.bf16.mxu0 0
    %319 = vmatpush2.bf16.msra.mxu0 0
    %320 = vmatprep.subr.bf16.mxu0 0
    %321 = vmatpush2.bf16.msra.mxu0 0
    %322 = vmatprep.subr.bf16.mxu0 0
    %323 = vmatpush2.bf16.msra.mxu0 0
    %324 = vmatprep.mubr.bf16.mxu0 0
    %325 = vmatmul.mubr.bf16.gmra.mxu0 %v219
    %v326 = vpop.f32.mrf.mxu0
    %v327 = vadd.f32 %v242, %v326
    %v328 = vpop.f32.mrf.mxu0
    %v329 = vpop.f32.mrf.mxu0
    %v330 = vadd.f32 %v242, %v329
    %v331 = vpop.f32.mrf.mxu0
    %332 = vmatprep.mubr.bf16.mxu0 0
    %333 = vmatmul.mubr.bf16.gmra.mxu0 %v220
    %v334 = vpop.f32.mrf.mxu0
    %v335 = vadd.f32 %v242, %v334
    %v336 = vpop.f32.mrf.mxu0
    %v337 = vpop.f32.mrf.mxu0
    %v338 = vadd.f32 %v242, %v337
    %v339 = vpop.f32.mrf.mxu0
    %340 = vdwg.mxu0
    %v341 = vmax.f32 %v327, 0.0
    %v342 = vmax.f32 %v330, 0.0
    %v343 = vmax.f32 %v335, 0.0
    %v344 = vmax.f32 %v338, 0.0
    %v345 = vpack.c.bf16 %v342, %v341
    %v346 = vpack.c.bf16 %v344, %v343
    %v347 = vld [vmem:[#allocation9] sm:$0xf]
    %v348 = vld [vmem:[#allocation9 + $0x4] sm:$0xf]
    %v349 = vld [vmem:[#allocation9 + $0x8] sm:$0xf]
    %v350 = vld [vmem:[#allocation9 + $0xc] sm:$0xf]
    %v351 = vld [vmem:[#allocation9 + $0x10] sm:$0xf]
    %v352 = vld [vmem:[#allocation9 + $0x14] sm:$0xf]
    %v353 = vld [vmem:[#allocation9 + $0x18] sm:$0xf]
    %v354 = vld [vmem:[#allocation9 + $0x1c] sm:$0xf]
    %v355 = vld [vmem:[#allocation9 + $0x20] sm:$0xf]
    %v356 = vld [vmem:[#allocation9 + $0x24] sm:$0xf]
    %v357 = vld [vmem:[#allocation9 + $0x28] sm:$0xf]
    %v358 = vld [vmem:[#allocation9 + $0x2c] sm:$0xf]
    %v359 = vld [vmem:[#allocation9 + $0x30] sm:$0xf]
    %v360 = vld [vmem:[#allocation9 + $0x34] sm:$0xf]
    %v361 = vld [vmem:[#allocation9 + $0x38] sm:$0xf]
    %v362 = vld [vmem:[#allocation9 + $0x3c] sm:$0xf]
    %v363 = vld [vmem:[%s6] sm:$0x1]
    %v365 = vlaneseq
    %v366 = vshrl.u32 %v365, 7
    %v367 = vsub.s32 0, %v366
    %v368 = vrot.slane %v363, %v367
    %v386 = vunpack.c.l.b16 %v347
    %v387 = vunpack.c.l.b16 %v348
    %v388 = vunpack.c.l.b16 %v349
    %v389 = vunpack.c.l.b16 %v350
    %v390 = vunpack.c.l.b16 %v351
    %v391 = vunpack.c.l.b16 %v352
    %v392 = vunpack.c.l.b16 %v353
    %v393 = vunpack.c.l.b16 %v354
    %v394 = vunpack.c.l.b16 %v355
    %v395 = vunpack.c.l.b16 %v356
    %v396 = vunpack.c.l.b16 %v357
    %v397 = vunpack.c.l.b16 %v358
    %v398 = vunpack.c.l.b16 %v359
    %v399 = vunpack.c.l.b16 %v360
    %v400 = vunpack.c.l.b16 %v361
    %v401 = vunpack.c.l.b16 %v362
    %v402 = vpack.c.b16 %v387, %v386
    %v403 = vpack.c.b16 %v389, %v388
    %v404 = vpack.c.b16 %v391, %v390
    %v405 = vpack.c.b16 %v393, %v392
    %v406 = vpack.c.b16 %v395, %v394
    %v407 = vpack.c.b16 %v397, %v396
    %v408 = vpack.c.b16 %v399, %v398
    %v409 = vpack.c.b16 %v401, %v400
    %418 = vmatprep.subr.bf16.mxu0 0
    %419 = vmatpush1.bf16.msra.mxu0 %v409
    %420 = vmatprep.subr.bf16.mxu0 0
    %421 = vmatpush1.bf16.msra.mxu0 %v408
    %422 = vmatprep.subr.bf16.mxu0 0
    %423 = vmatpush1.bf16.msra.mxu0 %v407
    %424 = vmatprep.subr.bf16.mxu0 0
    %425 = vmatpush1.bf16.msra.mxu0 %v406
    %426 = vmatprep.subr.bf16.mxu0 0
    %427 = vmatpush1.bf16.msra.mxu0 %v405
    %428 = vmatprep.subr.bf16.mxu0 0
    %429 = vmatpush1.bf16.msra.mxu0 %v404
    %430 = vmatprep.subr.bf16.mxu0 0
    %431 = vmatpush1.bf16.msra.mxu0 %v403
    %432 = vmatprep.subr.bf16.mxu0 0
    %433 = vmatpush1.bf16.msra.mxu0 %v402
    %434 = vmatprep.subr.bf16.mxu0 0
    %435 = vmatpush2.bf16.msra.mxu0 0
    %436 = vmatprep.subr.bf16.mxu0 0
    %437 = vmatpush2.bf16.msra.mxu0 0
    %438 = vmatprep.subr.bf16.mxu0 0
    %439 = vmatpush2.bf16.msra.mxu0 0
    %440 = vmatprep.subr.bf16.mxu0 0
    %441 = vmatpush2.bf16.msra.mxu0 0
    %442 = vmatprep.subr.bf16.mxu0 0
    %443 = vmatpush2.bf16.msra.mxu0 0
    %444 = vmatprep.subr.bf16.mxu0 0
    %445 = vmatpush2.bf16.msra.mxu0 0
    %446 = vmatprep.subr.bf16.mxu0 0
    %447 = vmatpush2.bf16.msra.mxu0 0
    %448 = vmatprep.subr.bf16.mxu0 0
    %449 = vmatpush2.bf16.msra.mxu0 0
    %450 = vmatprep.mubr.bf16.mxu0 0
    %451 = vmatmul.mubr.bf16.gmra.mxu0 %v345
    %v452 = vpop.f32.mrf.mxu0
    %v453 = vadd.f32 %v368, %v452
    %v454 = vpop.f32.mrf.mxu0
    %v455 = vpop.f32.mrf.mxu0
    %v456 = vadd.f32 %v368, %v455
    %v457 = vpop.f32.mrf.mxu0
    %458 = vmatprep.mubr.bf16.mxu0 0
    %459 = vmatmul.mubr.bf16.gmra.mxu0 %v346
    %v460 = vpop.f32.mrf.mxu0
    %v461 = vadd.f32 %v368, %v460
    %v462 = vpop.f32.mrf.mxu0
    %v463 = vpop.f32.mrf.mxu0
    %v464 = vadd.f32 %v368, %v463
    %v465 = vpop.f32.mrf.mxu0
    %466 = vdwg.mxu0
    %v467 = vmax.f32 %v453, 0.0
    %v468 = vmax.f32 %v456, 0.0
    %v469 = vmax.f32 %v461, 0.0
    %v470 = vmax.f32 %v464, 0.0
    %v471 = vpack.c.bf16 %v468, %v467
    %v472 = vpack.c.bf16 %v470, %v469
    %v474 = vsel %vm163, %v136, 0
    %476 = vmatprep.subr.bf16.mxu0 0
    %477 = vmatpush1.bf16.msra.mxu0 0
    %478 = vmatprep.subr.bf16.mxu0 0
    %479 = vmatpush1.bf16.msra.mxu0 0
    %480 = vmatprep.subr.bf16.mxu0 0
    %481 = vmatpush1.bf16.msra.mxu0 0
    %482 = vmatprep.subr.bf16.mxu0 0
    %483 = vmatpush1.bf16.msra.mxu0 0
    %484 = vmatprep.subr.bf16.mxu0 0
    %485 = vmatpush1.bf16.msra.mxu0 0
    %486 = vmatprep.subr.bf16.mxu0 0
    %487 = vmatpush1.bf16.msra.mxu0 0
    %488 = vmatprep.subr.bf16.mxu0 0
    %489 = vmatpush1.bf16.msra.mxu0 %v472
    %490 = vmatprep.subr.bf16.mxu0 0
    %491 = vmatpush1.bf16.msra.mxu0 %v471
    %492 = vmatprep.subr.bf16.mxu0 0
    %493 = vmatpush2.bf16.msra.mxu0 0
    %494 = vmatprep.subr.bf16.mxu0 0
    %495 = vmatpush2.bf16.msra.mxu0 0
    %496 = vmatprep.subr.bf16.mxu0 0
    %497 = vmatpush2.bf16.msra.mxu0 0
    %498 = vmatprep.subr.bf16.mxu0 0
    %499 = vmatpush2.bf16.msra.mxu0 0
    %500 = vmatprep.subr.bf16.mxu0 0
    %501 = vmatpush2.bf16.msra.mxu0 0
    %502 = vmatprep.subr.bf16.mxu0 0
    %503 = vmatpush2.bf16.msra.mxu0 0
    %504 = vmatprep.subr.bf16.mxu0 0
    %505 = vmatpush2.bf16.msra.mxu0 0
    %506 = vmatprep.subr.bf16.mxu0 0
    %507 = vmatpush2.bf16.msra.mxu0 0
    %508 = vmatprep.mubr.bf16.mxu0 0
    %509 = vmatmul.mubr.bf16.gmra.mxu0 %v474
    %v510 = vpop.f32.mrf.mxu0
    %v511 = vadd.f32 0.0, %v510
    %v512 = vpop.f32.mrf.mxu0
    %v513 = vpop.f32.mrf.mxu0
    %v514 = vpop.f32.mrf.mxu0
    %515 = vdwg.mxu0
    %v516 = vpack.c.bf16 %v511, %v511
    %v517 = vld [vmem:[#allocation10] sm:$0xf]
    %v518 = vld [vmem:[#allocation10 + $0x4] sm:$0xf]
    %v519 = vld [vmem:[#allocation10 + $0x8] sm:$0xf]
    %v520 = vld [vmem:[#allocation10 + $0xc] sm:$0xf]
    %v521 = vld [vmem:[#allocation10 + $0x10] sm:$0xf]
    %v522 = vld [vmem:[#allocation10 + $0x14] sm:$0xf]
    %v523 = vld [vmem:[#allocation10 + $0x18] sm:$0xf]
    %v524 = vld [vmem:[#allocation10 + $0x1c] sm:$0xf]
    %v525 = vld [vmem:[#allocation10 + $0x20] sm:$0xf]
    %v526 = vld [vmem:[#allocation10 + $0x24] sm:$0xf]
    %v527 = vld [vmem:[#allocation10 + $0x28] sm:$0xf]
    %v528 = vld [vmem:[#allocation10 + $0x2c] sm:$0xf]
    %v529 = vld [vmem:[#allocation10 + $0x30] sm:$0xf]
    %v530 = vld [vmem:[#allocation10 + $0x34] sm:$0xf]
    %v531 = vld [vmem:[#allocation10 + $0x38] sm:$0xf]
    %v532 = vld [vmem:[#allocation10 + $0x3c] sm:$0xf]
    %533 = vmatprep.subr.bf16.mxu0 0
    %534 = vmatpush1.bf16.msra.mxu0 0
    %535 = vmatprep.subr.bf16.mxu0 0
    %536 = vmatpush1.bf16.msra.mxu0 0
    %537 = vmatprep.subr.bf16.mxu0 0
    %538 = vmatpush1.bf16.msra.mxu0 0
    %539 = vmatprep.subr.bf16.mxu0 0
    %540 = vmatpush1.bf16.msra.mxu0 0
    %541 = vmatprep.subr.bf16.mxu0 0
    %542 = vmatpush1.bf16.msra.mxu0 0
    %543 = vmatprep.subr.bf16.mxu0 0
    %544 = vmatpush1.bf16.msra.mxu0 0
    %545 = vmatprep.subr.bf16.mxu0 0
    %546 = vmatpush1.bf16.msra.mxu0 %v472
    %547 = vmatprep.subr.bf16.mxu0 0
    %548 = vmatpush1.bf16.msra.mxu0 %v471
    %549 = vmatprep.subr.bf16.mxu0 0
    %550 = vmatpush2.bf16.msra.mxu0 0
    %551 = vmatprep.subr.bf16.mxu0 0
    %552 = vmatpush2.bf16.msra.mxu0 0
    %553 = vmatprep.subr.bf16.mxu0 0
    %554 = vmatpush2.bf16.msra.mxu0 0
    %555 = vmatprep.subr.bf16.mxu0 0
    %556 = vmatpush2.bf16.msra.mxu0 0
    %557 = vmatprep.subr.bf16.mxu0 0
    %558 = vmatpush2.bf16.msra.mxu0 0
    %559 = vmatprep.subr.bf16.mxu0 0
    %560 = vmatpush2.bf16.msra.mxu0 0
    %561 = vmatprep.subr.bf16.mxu0 0
    %562 = vmatpush2.bf16.msra.mxu0 0
    %563 = vmatprep.subr.bf16.mxu0 0
    %564 = vmatpush2.bf16.msra.mxu0 0
    %565 = vmatprep.mubr.bf16.mxu0 0
    %566 = vmatmul.mubr.bf16.gmra.mxu0 %v165
    %v567 = vpop.f32.mrf.mxu0
    %v568 = vadd.f32 0.0, %v567
    %v569 = vpop.f32.mrf.mxu0
    %v570 = vpop.f32.mrf.mxu0
    %v571 = vadd.f32 0.0, %v570
    %v572 = vpop.f32.mrf.mxu0
    %573 = vmatprep.mubr.bf16.mxu0 0
    %574 = vmatmul.mubr.bf16.gmra.mxu0 %v168
    %v575 = vpop.f32.mrf.mxu0
    %v576 = vadd.f32 0.0, %v575
    %v577 = vpop.f32.mrf.mxu0
    %v578 = vpop.f32.mrf.mxu0
    %v579 = vadd.f32 0.0, %v578
    %v580 = vpop.f32.mrf.mxu0
    %581 = vdwg.mxu0
    %v582 = vpack.c.bf16 %v571, %v568
    %v583 = vpack.c.bf16 %v579, %v576
    %s584 = scalar_lea.vmem [#allocation7], 64
    %v585 = vld [vmem:[%s584] sm:$0xf]
    %v586 = vld [vmem:[%s584 + $0x4] sm:$0xf]
    %v587 = vld [vmem:[%s584 + $0x8] sm:$0xf]
    %v588 = vld [vmem:[%s584 + $0xc] sm:$0xf]
    %v589 = vld [vmem:[%s584 + $0x10] sm:$0xf]
    %v590 = vld [vmem:[%s584 + $0x14] sm:$0xf]
    %v591 = vld [vmem:[%s584 + $0x18] sm:$0xf]
    %v592 = vld [vmem:[%s584 + $0x1c] sm:$0xf]
    %v593 = vld [vmem:[%s584 + $0x20] sm:$0xf]
    %v594 = vld [vmem:[%s584 + $0x24] sm:$0xf]
    %v595 = vld [vmem:[%s584 + $0x28] sm:$0xf]
    %v596 = vld [vmem:[%s584 + $0x2c] sm:$0xf]
    %v597 = vld [vmem:[%s584 + $0x30] sm:$0xf]
    %v598 = vld [vmem:[%s584 + $0x34] sm:$0xf]
    %v599 = vld [vmem:[%s584 + $0x38] sm:$0xf]
    %v600 = vld [vmem:[%s584 + $0x3c] sm:$0xf]
    %s601 = scalar_lea.vmem %s4, 1
    %v602 = vld [vmem:[%s601] sm:$0x1]
    %v604 = vlaneseq
    %v605 = vshrl.u32 %v604, 7
    %v606 = vsub.s32 0, %v605
    %v607 = vrot.slane %v602, %v606
    %v625 = vunpack.c.l.b16 %v585
    %v626 = vunpack.c.l.b16 %v586
    %v627 = vunpack.c.l.b16 %v587
    %v628 = vunpack.c.l.b16 %v588
    %v629 = vunpack.c.l.b16 %v589
    %v630 = vunpack.c.l.b16 %v590
    %v631 = vunpack.c.l.b16 %v591
    %v632 = vunpack.c.l.b16 %v592
    %v633 = vunpack.c.l.b16 %v593
    %v634 = vunpack.c.l.b16 %v594
    %v635 = vunpack.c.l.b16 %v595
    %v636 = vunpack.c.l.b16 %v596
    %v637 = vunpack.c.l.b16 %v597
    %v638 = vunpack.c.l.b16 %v598
    %v639 = vunpack.c.l.b16 %v599
    %v640 = vunpack.c.l.b16 %v600
    %v641 = vpack.c.b16 %v626, %v625
    %v642 = vpack.c.b16 %v628, %v627
    %v643 = vpack.c.b16 %v630, %v629
    %v644 = vpack.c.b16 %v632, %v631
    %v645 = vpack.c.b16 %v634, %v633
    %v646 = vpack.c.b16 %v636, %v635
    %v647 = vpack.c.b16 %v638, %v637
    %v648 = vpack.c.b16 %v640, %v639
    %657 = vmatprep.subr.bf16.mxu0 0
    %658 = vmatpush1.bf16.msra.mxu0 %v648
    %659 = vmatprep.subr.bf16.mxu0 0
    %660 = vmatpush1.bf16.msra.mxu0 %v647
    %661 = vmatprep.subr.bf16.mxu0 0
    %662 = vmatpush1.bf16.msra.mxu0 %v646
    %663 = vmatprep.subr.bf16.mxu0 0
    %664 = vmatpush1.bf16.msra.mxu0 %v645
    %665 = vmatprep.subr.bf16.mxu0 0
    %666 = vmatpush1.bf16.msra.mxu0 %v644
    %667 = vmatprep.subr.bf16.mxu0 0
    %668 = vmatpush1.bf16.msra.mxu0 %v643
    %669 = vmatprep.subr.bf16.mxu0 0
    %670 = vmatpush1.bf16.msra.mxu0 %v642
    %671 = vmatprep.subr.bf16.mxu0 0
    %672 = vmatpush1.bf16.msra.mxu0 %v641
    %673 = vmatprep.subr.bf16.mxu0 0
    %674 = vmatpush2.bf16.msra.mxu0 0
    %675 = vmatprep.subr.bf16.mxu0 0
    %676 = vmatpush2.bf16.msra.mxu0 0
    %677 = vmatprep.subr.bf16.mxu0 0
    %678 = vmatpush2.bf16.msra.mxu0 0
    %679 = vmatprep.subr.bf16.mxu0 0
    %680 = vmatpush2.bf16.msra.mxu0 0
    %681 = vmatprep.subr.bf16.mxu0 0
    %682 = vmatpush2.bf16.msra.mxu0 0
    %683 = vmatprep.subr.bf16.mxu0 0
    %684 = vmatpush2.bf16.msra.mxu0 0
    %685 = vmatprep.subr.bf16.mxu0 0
    %686 = vmatpush2.bf16.msra.mxu0 0
    %687 = vmatprep.subr.bf16.mxu0 0
    %688 = vmatpush2.bf16.msra.mxu0 0
    %689 = vmatprep.mubr.bf16.mxu0 0
    %690 = vmatmul.mubr.bf16.gmra.mxu0 %v582
    %v691 = vpop.f32.mrf.mxu0
    %v692 = vadd.f32 %v607, %v691
    %v693 = vpop.f32.mrf.mxu0
    %v694 = vpop.f32.mrf.mxu0
    %v695 = vadd.f32 %v607, %v694
    %v696 = vpop.f32.mrf.mxu0
    %697 = vmatprep.mubr.bf16.mxu0 0
    %698 = vmatmul.mubr.bf16.gmra.mxu0 %v583
    %v699 = vpop.f32.mrf.mxu0
    %v700 = vadd.f32 %v607, %v699
    %v701 = vpop.f32.mrf.mxu0
    %v702 = vpop.f32.mrf.mxu0
    %v703 = vadd.f32 %v607, %v702
    %v704 = vpop.f32.mrf.mxu0
    %705 = vdwg.mxu0
    %v706 = vmax.f32 %v692, 0.0
    %v707 = vmax.f32 %v695, 0.0
    %v708 = vmax.f32 %v700, 0.0
    %v709 = vmax.f32 %v703, 0.0
    %v710 = vpack.c.bf16 %v707, %v706
    %v711 = vpack.c.bf16 %v709, %v708
    %s712 = scalar_lea.vmem [#allocation9], 64
    %v713 = vld [vmem:[%s712] sm:$0xf]
    %v714 = vld [vmem:[%s712 + $0x4] sm:$0xf]
    %v715 = vld [vmem:[%s712 + $0x8] sm:$0xf]
    %v716 = vld [vmem:[%s712 + $0xc] sm:$0xf]
    %v717 = vld [vmem:[%s712 + $0x10] sm:$0xf]
    %v718 = vld [vmem:[%s712 + $0x14] sm:$0xf]
    %v719 = vld [vmem:[%s712 + $0x18] sm:$0xf]
    %v720 = vld [vmem:[%s712 + $0x1c] sm:$0xf]
    %v721 = vld [vmem:[%s712 + $0x20] sm:$0xf]
    %v722 = vld [vmem:[%s712 + $0x24] sm:$0xf]
    %v723 = vld [vmem:[%s712 + $0x28] sm:$0xf]
    %v724 = vld [vmem:[%s712 + $0x2c] sm:$0xf]
    %v725 = vld [vmem:[%s712 + $0x30] sm:$0xf]
    %v726 = vld [vmem:[%s712 + $0x34] sm:$0xf]
    %v727 = vld [vmem:[%s712 + $0x38] sm:$0xf]
    %v728 = vld [vmem:[%s712 + $0x3c] sm:$0xf]
    %s729 = scalar_lea.vmem %s6, 1
    %v730 = vld [vmem:[%s729] sm:$0x1]
    %v732 = vlaneseq
    %v733 = vshrl.u32 %v732, 7
    %v734 = vsub.s32 0, %v733
    %v735 = vrot.slane %v730, %v734
    %v753 = vunpack.c.l.b16 %v713
    %v754 = vunpack.c.l.b16 %v714
    %v755 = vunpack.c.l.b16 %v715
    %v756 = vunpack.c.l.b16 %v716
    %v757 = vunpack.c.l.b16 %v717
    %v758 = vunpack.c.l.b16 %v718
    %v759 = vunpack.c.l.b16 %v719
    %v760 = vunpack.c.l.b16 %v720
    %v761 = vunpack.c.l.b16 %v721
    %v762 = vunpack.c.l.b16 %v722
    %v763 = vunpack.c.l.b16 %v723
    %v764 = vunpack.c.l.b16 %v724
    %v765 = vunpack.c.l.b16 %v725
    %v766 = vunpack.c.l.b16 %v726
    %v767 = vunpack.c.l.b16 %v727
    %v768 = vunpack.c.l.b16 %v728
    %v769 = vpack.c.b16 %v754, %v753
    %v770 = vpack.c.b16 %v756, %v755
    %v771 = vpack.c.b16 %v758, %v757
    %v772 = vpack.c.b16 %v760, %v759
    %v773 = vpack.c.b16 %v762, %v761
    %v774 = vpack.c.b16 %v764, %v763
    %v775 = vpack.c.b16 %v766, %v765
    %v776 = vpack.c.b16 %v768, %v767
    %785 = vmatprep.subr.bf16.mxu0 0
    %786 = vmatpush1.bf16.msra.mxu0 %v776
    %787 = vmatprep.subr.bf16.mxu0 0
    %788 = vmatpush1.bf16.msra.mxu0 %v775
    %789 = vmatprep.subr.bf16.mxu0 0
    %790 = vmatpush1.bf16.msra.mxu0 %v774
    %791 = vmatprep.subr.bf16.mxu0 0
    %792 = vmatpush1.bf16.msra.mxu0 %v773
    %793 = vmatprep.subr.bf16.mxu0 0
    %794 = vmatpush1.bf16.msra.mxu0 %v772
    %795 = vmatprep.subr.bf16.mxu0 0
    %796 = vmatpush1.bf16.msra.mxu0 %v771
    %797 = vmatprep.subr.bf16.mxu0 0
    %798 = vmatpush1.bf16.msra.mxu0 %v770
    %799 = vmatprep.subr.bf16.mxu0 0
    %800 = vmatpush1.bf16.msra.mxu0 %v769
    %801 = vmatprep.subr.bf16.mxu0 0
    %802 = vmatpush2.bf16.msra.mxu0 0
    %803 = vmatprep.subr.bf16.mxu0 0
    %804 = vmatpush2.bf16.msra.mxu0 0
    %805 = vmatprep.subr.bf16.mxu0 0
    %806 = vmatpush2.bf16.msra.mxu0 0
    %807 = vmatprep.subr.bf16.mxu0 0
    %808 = vmatpush2.bf16.msra.mxu0 0
    %809 = vmatprep.subr.bf16.mxu0 0
    %810 = vmatpush2.bf16.msra.mxu0 0
    %811 = vmatprep.subr.bf16.mxu0 0
    %812 = vmatpush2.bf16.msra.mxu0 0
    %813 = vmatprep.subr.bf16.mxu0 0
    %814 = vmatpush2.bf16.msra.mxu0 0
    %815 = vmatprep.subr.bf16.mxu0 0
    %816 = vmatpush2.bf16.msra.mxu0 0
    %817 = vmatprep.mubr.bf16.mxu0 0
    %818 = vmatmul.mubr.bf16.gmra.mxu0 %v710
    %v819 = vpop.f32.mrf.mxu0
    %v820 = vadd.f32 %v735, %v819
    %v821 = vpop.f32.mrf.mxu0
    %v822 = vpop.f32.mrf.mxu0
    %v823 = vadd.f32 %v735, %v822
    %v824 = vpop.f32.mrf.mxu0
    %825 = vmatprep.mubr.bf16.mxu0 0
    %826 = vmatmul.mubr.bf16.gmra.mxu0 %v711
    %v827 = vpop.f32.mrf.mxu0
    %v828 = vadd.f32 %v735, %v827
    %v829 = vpop.f32.mrf.mxu0
    %v830 = vpop.f32.mrf.mxu0
    %v831 = vadd.f32 %v735, %v830
    %v832 = vpop.f32.mrf.mxu0
    %833 = vdwg.mxu0
    %v834 = vmax.f32 %v820, 0.0
    %v835 = vmax.f32 %v823, 0.0
    %v836 = vmax.f32 %v828, 0.0
    %v837 = vmax.f32 %v831, 0.0
    %v838 = vpack.c.bf16 %v835, %v834
    %v839 = vpack.c.bf16 %v837, %v836
    %840 = vmatprep.subr.bf16.mxu0 0
    %841 = vmatpush1.bf16.msra.mxu0 0
    %842 = vmatprep.subr.bf16.mxu0 0
    %843 = vmatpush1.bf16.msra.mxu0 0
    %844 = vmatprep.subr.bf16.mxu0 0
    %845 = vmatpush1.bf16.msra.mxu0 0
    %846 = vmatprep.subr.bf16.mxu0 0
    %847 = vmatpush1.bf16.msra.mxu0 0
    %848 = vmatprep.subr.bf16.mxu0 0
    %849 = vmatpush1.bf16.msra.mxu0 0
    %850 = vmatprep.subr.bf16.mxu0 0
    %851 = vmatpush1.bf16.msra.mxu0 0
    %852 = vmatprep.subr.bf16.mxu0 0
    %853 = vmatpush1.bf16.msra.mxu0 %v839
    %854 = vmatprep.subr.bf16.mxu0 0
    %855 = vmatpush1.bf16.msra.mxu0 %v838
    %856 = vmatprep.subr.bf16.mxu0 0
    %857 = vmatpush2.bf16.msra.mxu0 0
    %858 = vmatprep.subr.bf16.mxu0 0
    %859 = vmatpush2.bf16.msra.mxu0 0
    %860 = vmatprep.subr.bf16.mxu0 0
    %861 = vmatpush2.bf16.msra.mxu0 0
    %862 = vmatprep.subr.bf16.mxu0 0
    %863 = vmatpush2.bf16.msra.mxu0 0
    %864 = vmatprep.subr.bf16.mxu0 0
    %865 = vmatpush2.bf16.msra.mxu0 0
    %866 = vmatprep.subr.bf16.mxu0 0
    %867 = vmatpush2.bf16.msra.mxu0 0
    %868 = vmatprep.subr.bf16.mxu0 0
    %869 = vmatpush2.bf16.msra.mxu0 0
    %870 = vmatprep.subr.bf16.mxu0 0
    %871 = vmatpush2.bf16.msra.mxu0 0
    %872 = vmatprep.mubr.bf16.mxu0 0
    %873 = vmatmul.mubr.bf16.gmra.mxu0 %v474
    %v874 = vpop.f32.mrf.mxu0
    %v875 = vadd.f32 0.0, %v874
    %v876 = vpop.f32.mrf.mxu0
    %v877 = vpop.f32.mrf.mxu0
    %v878 = vpop.f32.mrf.mxu0
    %879 = vdwg.mxu0
    %v880 = vpack.c.bf16 %v875, %v875
    %s881 = scalar_lea.vmem [#allocation10], 64
    %v882 = vld [vmem:[%s881] sm:$0xf]
    %v883 = vld [vmem:[%s881 + $0x4] sm:$0xf]
    %v884 = vld [vmem:[%s881 + $0x8] sm:$0xf]
    %v885 = vld [vmem:[%s881 + $0xc] sm:$0xf]
    %v886 = vld [vmem:[%s881 + $0x10] sm:$0xf]
    %v887 = vld [vmem:[%s881 + $0x14] sm:$0xf]
    %v888 = vld [vmem:[%s881 + $0x18] sm:$0xf]
    %v889 = vld [vmem:[%s881 + $0x1c] sm:$0xf]
    %v890 = vld [vmem:[%s881 + $0x20] sm:$0xf]
    %v891 = vld [vmem:[%s881 + $0x24] sm:$0xf]
    %v892 = vld [vmem:[%s881 + $0x28] sm:$0xf]
    %v893 = vld [vmem:[%s881 + $0x2c] sm:$0xf]
    %v894 = vld [vmem:[%s881 + $0x30] sm:$0xf]
    %v895 = vld [vmem:[%s881 + $0x34] sm:$0xf]
    %v896 = vld [vmem:[%s881 + $0x38] sm:$0xf]
    %v897 = vld [vmem:[%s881 + $0x3c] sm:$0xf]
    %v914 = vunpack.c.l.b16 %v882
    %v915 = vunpack.c.l.b16 %v883
    %v916 = vunpack.c.l.b16 %v884
    %v917 = vunpack.c.l.b16 %v885
    %v918 = vunpack.c.l.b16 %v886
    %v919 = vunpack.c.l.b16 %v887
    %v920 = vunpack.c.l.b16 %v888
    %v921 = vunpack.c.l.b16 %v889
    %v922 = vunpack.c.l.b16 %v890
    %v923 = vunpack.c.l.b16 %v891
    %v924 = vunpack.c.l.b16 %v892
    %v925 = vunpack.c.l.b16 %v893
    %v926 = vunpack.c.l.b16 %v894
    %v927 = vunpack.c.l.b16 %v895
    %v928 = vunpack.c.l.b16 %v896
    %v929 = vunpack.c.l.b16 %v897
    %v930 = vpack.c.b16 %v915, %v914
    %v931 = vpack.c.b16 %v917, %v916
    %v932 = vpack.c.b16 %v919, %v918
    %v933 = vpack.c.b16 %v921, %v920
    %v934 = vpack.c.b16 %v923, %v922
    %v935 = vpack.c.b16 %v925, %v924
    %v936 = vpack.c.b16 %v927, %v926
    %v937 = vpack.c.b16 %v929, %v928
    %946 = vmatprep.subr.bf16.mxu0 0
    %947 = vmatpush1.bf16.msra.mxu0 %v937
    %948 = vmatprep.subr.bf16.mxu0 0
    %949 = vmatpush1.bf16.msra.mxu0 %v936
    %950 = vmatprep.subr.bf16.mxu0 0
    %951 = vmatpush1.bf16.msra.mxu0 %v935
    %952 = vmatprep.subr.bf16.mxu0 0
    %953 = vmatpush1.bf16.msra.mxu0 %v934
    %954 = vmatprep.subr.bf16.mxu0 0
    %955 = vmatpush1.bf16.msra.mxu0 %v933
    %956 = vmatprep.subr.bf16.mxu0 0
    %957 = vmatpush1.bf16.msra.mxu0 %v932
    %958 = vmatprep.subr.bf16.mxu0 0
    %959 = vmatpush1.bf16.msra.mxu0 %v931
    %960 = vmatprep.subr.bf16.mxu0 0
    %961 = vmatpush1.bf16.msra.mxu0 %v930
    %962 = vmatprep.subr.bf16.mxu0 0
    %963 = vmatpush2.bf16.msra.mxu0 0
    %964 = vmatprep.subr.bf16.mxu0 0
    %965 = vmatpush2.bf16.msra.mxu0 0
    %966 = vmatprep.subr.bf16.mxu0 0
    %967 = vmatpush2.bf16.msra.mxu0 0
    %968 = vmatprep.subr.bf16.mxu0 0
    %969 = vmatpush2.bf16.msra.mxu0 0
    %970 = vmatprep.subr.bf16.mxu0 0
    %971 = vmatpush2.bf16.msra.mxu0 0
    %972 = vmatprep.subr.bf16.mxu0 0
    %973 = vmatpush2.bf16.msra.mxu0 0
    %974 = vmatprep.subr.bf16.mxu0 0
    %975 = vmatpush2.bf16.msra.mxu0 0
    %976 = vmatprep.subr.bf16.mxu0 0
    %977 = vmatpush2.bf16.msra.mxu0 0
    %978 = vmatprep.mubr.bf16.mxu0 0
    %979 = vmatmul.mubr.bf16.gmra.mxu0 %v880
    %v980 = vpop.f32.mrf.mxu0
    %v981 = vadd.f32 0.0, %v980
    %v982 = vpop.f32.mrf.mxu0
    %v983 = vpop.f32.mrf.mxu0
    %v984 = vpop.f32.mrf.mxu0
    %985 = vdwg.mxu0
    %v1002 = vunpack.c.l.b16 %v517
    %v1003 = vunpack.c.l.b16 %v518
    %v1004 = vunpack.c.l.b16 %v519
    %v1005 = vunpack.c.l.b16 %v520
    %v1006 = vunpack.c.l.b16 %v521
    %v1007 = vunpack.c.l.b16 %v522
    %v1008 = vunpack.c.l.b16 %v523
    %v1009 = vunpack.c.l.b16 %v524
    %v1010 = vunpack.c.l.b16 %v525
    %v1011 = vunpack.c.l.b16 %v526
    %v1012 = vunpack.c.l.b16 %v527
    %v1013 = vunpack.c.l.b16 %v528
    %v1014 = vunpack.c.l.b16 %v529
    %v1015 = vunpack.c.l.b16 %v530
    %v1016 = vunpack.c.l.b16 %v531
    %v1017 = vunpack.c.l.b16 %v532
    %v1018 = vpack.c.b16 %v1003, %v1002
    %v1019 = vpack.c.b16 %v1005, %v1004
    %v1020 = vpack.c.b16 %v1007, %v1006
    %v1021 = vpack.c.b16 %v1009, %v1008
    %v1022 = vpack.c.b16 %v1011, %v1010
    %v1023 = vpack.c.b16 %v1013, %v1012
    %v1024 = vpack.c.b16 %v1015, %v1014
    %v1025 = vpack.c.b16 %v1017, %v1016
    %1034 = vmatprep.subr.bf16.mxu0 0
    %1035 = vmatpush1.bf16.msra.mxu0 %v1025
    %1036 = vmatprep.subr.bf16.mxu0 0
    %1037 = vmatpush1.bf16.msra.mxu0 %v1024
    %1038 = vmatprep.subr.bf16.mxu0 0
    %1039 = vmatpush1.bf16.msra.mxu0 %v1023
    %1040 = vmatprep.subr.bf16.mxu0 0
    %1041 = vmatpush1.bf16.msra.mxu0 %v1022
    %1042 = vmatprep.subr.bf16.mxu0 0
    %1043 = vmatpush1.bf16.msra.mxu0 %v1021
    %1044 = vmatprep.subr.bf16.mxu0 0
    %1045 = vmatpush1.bf16.msra.mxu0 %v1020
    %1046 = vmatprep.subr.bf16.mxu0 0
    %1047 = vmatpush1.bf16.msra.mxu0 %v1019
    %1048 = vmatprep.subr.bf16.mxu0 0
    %1049 = vmatpush1.bf16.msra.mxu0 %v1018
    %1050 = vmatprep.subr.bf16.mxu0 0
    %1051 = vmatpush2.bf16.msra.mxu0 0
    %1052 = vmatprep.subr.bf16.mxu0 0
    %1053 = vmatpush2.bf16.msra.mxu0 0
    %1054 = vmatprep.subr.bf16.mxu0 0
    %1055 = vmatpush2.bf16.msra.mxu0 0
    %1056 = vmatprep.subr.bf16.mxu0 0
    %1057 = vmatpush2.bf16.msra.mxu0 0
    %1058 = vmatprep.subr.bf16.mxu0 0
    %1059 = vmatpush2.bf16.msra.mxu0 0
    %1060 = vmatprep.subr.bf16.mxu0 0
    %1061 = vmatpush2.bf16.msra.mxu0 0
    %1062 = vmatprep.subr.bf16.mxu0 0
    %1063 = vmatpush2.bf16.msra.mxu0 0
    %1064 = vmatprep.subr.bf16.mxu0 0
    %1065 = vmatpush2.bf16.msra.mxu0 0
    %1066 = vmatprep.mubr.bf16.mxu0 0
    %1067 = vmatmul.mubr.bf16.gmra.mxu0 %v516
    %v1068 = vpop.f32.mrf.mxu0
    %v1069 = vadd.f32 %v981, %v1068
    %v1070 = vpop.f32.mrf.mxu0
    %v1071 = vpop.f32.mrf.mxu0
    %v1072 = vpop.f32.mrf.mxu0
    %1073 = vdwg.mxu0
    %1074 = vmatprep.subr.bf16.mxu0 0
    %1075 = vmatpush1.bf16.msra.mxu0 0
    %1076 = vmatprep.subr.bf16.mxu0 0
    %1077 = vmatpush1.bf16.msra.mxu0 0
    %1078 = vmatprep.subr.bf16.mxu0 0
    %1079 = vmatpush1.bf16.msra.mxu0 0
    %1080 = vmatprep.subr.bf16.mxu0 0
    %1081 = vmatpush1.bf16.msra.mxu0 0
    %1082 = vmatprep.subr.bf16.mxu0 0
    %1083 = vmatpush1.bf16.msra.mxu0 0
    %1084 = vmatprep.subr.bf16.mxu0 0
    %1085 = vmatpush1.bf16.msra.mxu0 0
    %1086 = vmatprep.subr.bf16.mxu0 0
    %1087 = vmatpush1.bf16.msra.mxu0 %v839
    %1088 = vmatprep.subr.bf16.mxu0 0
    %1089 = vmatpush1.bf16.msra.mxu0 %v838
    %1090 = vmatprep.subr.bf16.mxu0 0
    %1091 = vmatpush2.bf16.msra.mxu0 0
    %1092 = vmatprep.subr.bf16.mxu0 0
    %1093 = vmatpush2.bf16.msra.mxu0 0
    %1094 = vmatprep.subr.bf16.mxu0 0
    %1095 = vmatpush2.bf16.msra.mxu0 0
    %1096 = vmatprep.subr.bf16.mxu0 0
    %1097 = vmatpush2.bf16.msra.mxu0 0
    %1098 = vmatprep.subr.bf16.mxu0 0
    %1099 = vmatpush2.bf16.msra.mxu0 0
    %1100 = vmatprep.subr.bf16.mxu0 0
    %1101 = vmatpush2.bf16.msra.mxu0 0
    %1102 = vmatprep.subr.bf16.mxu0 0
    %1103 = vmatpush2.bf16.msra.mxu0 0
    %1104 = vmatprep.subr.bf16.mxu0 0
    %1105 = vmatpush2.bf16.msra.mxu0 0
    %1106 = vmatprep.mubr.bf16.mxu0 0
    %1107 = vmatmul.mubr.bf16.gmra.mxu0 %v165
    %v1108 = vpop.f32.mrf.mxu0
    %v1109 = vadd.f32 0.0, %v1108
    %v1110 = vpop.f32.mrf.mxu0
    %v1111 = vpop.f32.mrf.mxu0
    %v1112 = vadd.f32 0.0, %v1111
    %v1113 = vpop.f32.mrf.mxu0
    %1114 = vmatprep.mubr.bf16.mxu0 0
    %1115 = vmatmul.mubr.bf16.gmra.mxu0 %v168
    %v1116 = vpop.f32.mrf.mxu0
    %v1117 = vadd.f32 0.0, %v1116
    %v1118 = vpop.f32.mrf.mxu0
    %v1119 = vpop.f32.mrf.mxu0
    %v1120 = vadd.f32 0.0, %v1119
    %v1121 = vpop.f32.mrf.mxu0
    %1122 = vdwg.mxu0
    %v1123 = vpack.c.bf16 %v1112, %v1109
    %v1124 = vpack.c.bf16 %v1120, %v1117
    %s1125 = scalar_lea.vmem [#allocation7], 128
    %v1126 = vld [vmem:[%s1125] sm:$0xf]
    %v1127 = vld [vmem:[%s1125 + $0x4] sm:$0xf]
    %v1128 = vld [vmem:[%s1125 + $0x8] sm:$0xf]
    %v1129 = vld [vmem:[%s1125 + $0xc] sm:$0xf]
    %v1130 = vld [vmem:[%s1125 + $0x10] sm:$0xf]
    %v1131 = vld [vmem:[%s1125 + $0x14] sm:$0xf]
    %v1132 = vld [vmem:[%s1125 + $0x18] sm:$0xf]
    %v1133 = vld [vmem:[%s1125 + $0x1c] sm:$0xf]
    %v1134 = vld [vmem:[%s1125 + $0x20] sm:$0xf]
    %v1135 = vld [vmem:[%s1125 + $0x24] sm:$0xf]
    %v1136 = vld [vmem:[%s1125 + $0x28] sm:$0xf]
    %v1137 = vld [vmem:[%s1125 + $0x2c] sm:$0xf]
    %v1138 = vld [vmem:[%s1125 + $0x30] sm:$0xf]
    %v1139 = vld [vmem:[%s1125 + $0x34] sm:$0xf]
    %v1140 = vld [vmem:[%s1125 + $0x38] sm:$0xf]
    %v1141 = vld [vmem:[%s1125 + $0x3c] sm:$0xf]
    %s1142 = scalar_lea.vmem %s4, 2
    %v1143 = vld [vmem:[%s1142] sm:$0x1]
    %v1145 = vlaneseq
    %v1146 = vshrl.u32 %v1145, 7
    %v1147 = vsub.s32 0, %v1146
    %v1148 = vrot.slane %v1143, %v1147
    %v1166 = vunpack.c.l.b16 %v1126
    %v1167 = vunpack.c.l.b16 %v1127
    %v1168 = vunpack.c.l.b16 %v1128
    %v1169 = vunpack.c.l.b16 %v1129
    %v1170 = vunpack.c.l.b16 %v1130
    %v1171 = vunpack.c.l.b16 %v1131
    %v1172 = vunpack.c.l.b16 %v1132
    %v1173 = vunpack.c.l.b16 %v1133
    %v1174 = vunpack.c.l.b16 %v1134
    %v1175 = vunpack.c.l.b16 %v1135
    %v1176 = vunpack.c.l.b16 %v1136
    %v1177 = vunpack.c.l.b16 %v1137
    %v1178 = vunpack.c.l.b16 %v1138
    %v1179 = vunpack.c.l.b16 %v1139
    %v1180 = vunpack.c.l.b16 %v1140
    %v1181 = vunpack.c.l.b16 %v1141
    %v1182 = vpack.c.b16 %v1167, %v1166
    %v1183 = vpack.c.b16 %v1169, %v1168
    %v1184 = vpack.c.b16 %v1171, %v1170
    %v1185 = vpack.c.b16 %v1173, %v1172
    %v1186 = vpack.c.b16 %v1175, %v1174
    %v1187 = vpack.c.b16 %v1177, %v1176
    %v1188 = vpack.c.b16 %v1179, %v1178
    %v1189 = vpack.c.b16 %v1181, %v1180
    %1198 = vmatprep.subr.bf16.mxu0 0
    %1199 = vmatpush1.bf16.msra.mxu0 %v1189
    %1200 = vmatprep.subr.bf16.mxu0 0
    %1201 = vmatpush1.bf16.msra.mxu0 %v1188
    %1202 = vmatprep.subr.bf16.mxu0 0
    %1203 = vmatpush1.bf16.msra.mxu0 %v1187
    %1204 = vmatprep.subr.bf16.mxu0 0
    %1205 = vmatpush1.bf16.msra.mxu0 %v1186
    %1206 = vmatprep.subr.bf16.mxu0 0
    %1207 = vmatpush1.bf16.msra.mxu0 %v1185
    %1208 = vmatprep.subr.bf16.mxu0 0
    %1209 = vmatpush1.bf16.msra.mxu0 %v1184
    %1210 = vmatprep.subr.bf16.mxu0 0
    %1211 = vmatpush1.bf16.msra.mxu0 %v1183
    %1212 = vmatprep.subr.bf16.mxu0 0
    %1213 = vmatpush1.bf16.msra.mxu0 %v1182
    %1214 = vmatprep.subr.bf16.mxu0 0
    %1215 = vmatpush2.bf16.msra.mxu0 0
    %1216 = vmatprep.subr.bf16.mxu0 0
    %1217 = vmatpush2.bf16.msra.mxu0 0
    %1218 = vmatprep.subr.bf16.mxu0 0
    %1219 = vmatpush2.bf16.msra.mxu0 0
    %1220 = vmatprep.subr.bf16.mxu0 0
    %1221 = vmatpush2.bf16.msra.mxu0 0
    %1222 = vmatprep.subr.bf16.mxu0 0
    %1223 = vmatpush2.bf16.msra.mxu0 0
    %1224 = vmatprep.subr.bf16.mxu0 0
    %1225 = vmatpush2.bf16.msra.mxu0 0
    %1226 = vmatprep.subr.bf16.mxu0 0
    %1227 = vmatpush2.bf16.msra.mxu0 0
    %1228 = vmatprep.subr.bf16.mxu0 0
    %1229 = vmatpush2.bf16.msra.mxu0 0
    %1230 = vmatprep.mubr.bf16.mxu0 0
    %1231 = vmatmul.mubr.bf16.gmra.mxu0 %v1123
    %v1232 = vpop.f32.mrf.mxu0
    %v1233 = vadd.f32 %v1148, %v1232
    %v1234 = vpop.f32.mrf.mxu0
    %v1235 = vpop.f32.mrf.mxu0
    %v1236 = vadd.f32 %v1148, %v1235
    %v1237 = vpop.f32.mrf.mxu0
    %1238 = vmatprep.mubr.bf16.mxu0 0
    %1239 = vmatmul.mubr.bf16.gmra.mxu0 %v1124
    %v1240 = vpop.f32.mrf.mxu0
    %v1241 = vadd.f32 %v1148, %v1240
    %v1242 = vpop.f32.mrf.mxu0
    %v1243 = vpop.f32.mrf.mxu0
    %v1244 = vadd.f32 %v1148, %v1243
    %v1245 = vpop.f32.mrf.mxu0
    %1246 = vdwg.mxu0
    %v1247 = vmax.f32 %v1233, 0.0
    %v1248 = vmax.f32 %v1236, 0.0
    %v1249 = vmax.f32 %v1241, 0.0
    %v1250 = vmax.f32 %v1244, 0.0
    %v1251 = vpack.c.bf16 %v1248, %v1247
    %v1252 = vpack.c.bf16 %v1250, %v1249
    %s1253 = scalar_lea.vmem [#allocation9], 128
    %v1254 = vld [vmem:[%s1253] sm:$0xf]
    %v1255 = vld [vmem:[%s1253 + $0x4] sm:$0xf]
    %v1256 = vld [vmem:[%s1253 + $0x8] sm:$0xf]
    %v1257 = vld [vmem:[%s1253 + $0xc] sm:$0xf]
    %v1258 = vld [vmem:[%s1253 + $0x10] sm:$0xf]
    %v1259 = vld [vmem:[%s1253 + $0x14] sm:$0xf]
    %v1260 = vld [vmem:[%s1253 + $0x18] sm:$0xf]
    %v1261 = vld [vmem:[%s1253 + $0x1c] sm:$0xf]
    %v1262 = vld [vmem:[%s1253 + $0x20] sm:$0xf]
    %v1263 = vld [vmem:[%s1253 + $0x24] sm:$0xf]
    %v1264 = vld [vmem:[%s1253 + $0x28] sm:$0xf]
    %v1265 = vld [vmem:[%s1253 + $0x2c] sm:$0xf]
    %v1266 = vld [vmem:[%s1253 + $0x30] sm:$0xf]
    %v1267 = vld [vmem:[%s1253 + $0x34] sm:$0xf]
    %v1268 = vld [vmem:[%s1253 + $0x38] sm:$0xf]
    %v1269 = vld [vmem:[%s1253 + $0x3c] sm:$0xf]
    %s1270 = scalar_lea.vmem %s6, 2
    %v1271 = vld [vmem:[%s1270] sm:$0x1]
    %v1273 = vlaneseq
    %v1274 = vshrl.u32 %v1273, 7
    %v1275 = vsub.s32 0, %v1274
    %v1276 = vrot.slane %v1271, %v1275
    %v1294 = vunpack.c.l.b16 %v1254
    %v1295 = vunpack.c.l.b16 %v1255
    %v1296 = vunpack.c.l.b16 %v1256
    %v1297 = vunpack.c.l.b16 %v1257
    %v1298 = vunpack.c.l.b16 %v1258
    %v1299 = vunpack.c.l.b16 %v1259
    %v1300 = vunpack.c.l.b16 %v1260
    %v1301 = vunpack.c.l.b16 %v1261
    %v1302 = vunpack.c.l.b16 %v1262
    %v1303 = vunpack.c.l.b16 %v1263
    %v1304 = vunpack.c.l.b16 %v1264
    %v1305 = vunpack.c.l.b16 %v1265
    %v1306 = vunpack.c.l.b16 %v1266
    %v1307 = vunpack.c.l.b16 %v1267
    %v1308 = vunpack.c.l.b16 %v1268
    %v1309 = vunpack.c.l.b16 %v1269
    %v1310 = vpack.c.b16 %v1295, %v1294
    %v1311 = vpack.c.b16 %v1297, %v1296
    %v1312 = vpack.c.b16 %v1299, %v1298
    %v1313 = vpack.c.b16 %v1301, %v1300
    %v1314 = vpack.c.b16 %v1303, %v1302
    %v1315 = vpack.c.b16 %v1305, %v1304
    %v1316 = vpack.c.b16 %v1307, %v1306
    %v1317 = vpack.c.b16 %v1309, %v1308
    %1326 = vmatprep.subr.bf16.mxu0 0
    %1327 = vmatpush1.bf16.msra.mxu0 %v1317
    %1328 = vmatprep.subr.bf16.mxu0 0
    %1329 = vmatpush1.bf16.msra.mxu0 %v1316
    %1330 = vmatprep.subr.bf16.mxu0 0
    %1331 = vmatpush1.bf16.msra.mxu0 %v1315
    %1332 = vmatprep.subr.bf16.mxu0 0
    %1333 = vmatpush1.bf16.msra.mxu0 %v1314
    %1334 = vmatprep.subr.bf16.mxu0 0
    %1335 = vmatpush1.bf16.msra.mxu0 %v1313
    %1336 = vmatprep.subr.bf16.mxu0 0
    %1337 = vmatpush1.bf16.msra.mxu0 %v1312
    %1338 = vmatprep.subr.bf16.mxu0 0
    %1339 = vmatpush1.bf16.msra.mxu0 %v1311
    %1340 = vmatprep.subr.bf16.mxu0 0
    %1341 = vmatpush1.bf16.msra.mxu0 %v1310
    %1342 = vmatprep.subr.bf16.mxu0 0
    %1343 = vmatpush2.bf16.msra.mxu0 0
    %1344 = vmatprep.subr.bf16.mxu0 0
    %1345 = vmatpush2.bf16.msra.mxu0 0
    %1346 = vmatprep.subr.bf16.mxu0 0
    %1347 = vmatpush2.bf16.msra.mxu0 0
    %1348 = vmatprep.subr.bf16.mxu0 0
    %1349 = vmatpush2.bf16.msra.mxu0 0
    %1350 = vmatprep.subr.bf16.mxu0 0
    %1351 = vmatpush2.bf16.msra.mxu0 0
    %1352 = vmatprep.subr.bf16.mxu0 0
    %1353 = vmatpush2.bf16.msra.mxu0 0
    %1354 = vmatprep.subr.bf16.mxu0 0
    %1355 = vmatpush2.bf16.msra.mxu0 0
    %1356 = vmatprep.subr.bf16.mxu0 0
    %1357 = vmatpush2.bf16.msra.mxu0 0
    %1358 = vmatprep.mubr.bf16.mxu0 0
    %1359 = vmatmul.mubr.bf16.gmra.mxu0 %v1251
    %v1360 = vpop.f32.mrf.mxu0
    %v1361 = vadd.f32 %v1276, %v1360
    %v1362 = vpop.f32.mrf.mxu0
    %v1363 = vpop.f32.mrf.mxu0
    %v1364 = vadd.f32 %v1276, %v1363
    %v1365 = vpop.f32.mrf.mxu0
    %1366 = vmatprep.mubr.bf16.mxu0 0
    %1367 = vmatmul.mubr.bf16.gmra.mxu0 %v1252
    %v1368 = vpop.f32.mrf.mxu0
    %v1369 = vadd.f32 %v1276, %v1368
    %v1370 = vpop.f32.mrf.mxu0
    %v1371 = vpop.f32.mrf.mxu0
    %v1372 = vadd.f32 %v1276, %v1371
    %v1373 = vpop.f32.mrf.mxu0
    %1374 = vdwg.mxu0
    %v1375 = vmax.f32 %v1361, 0.0
    %v1376 = vmax.f32 %v1364, 0.0
    %v1377 = vmax.f32 %v1369, 0.0
    %v1378 = vmax.f32 %v1372, 0.0
    %v1379 = vpack.c.bf16 %v1376, %v1375
    %v1380 = vpack.c.bf16 %v1378, %v1377
    %1381 = vmatprep.subr.bf16.mxu0 0
    %1382 = vmatpush1.bf16.msra.mxu0 0
    %1383 = vmatprep.subr.bf16.mxu0 0
    %1384 = vmatpush1.bf16.msra.mxu0 0
    %1385 = vmatprep.subr.bf16.mxu0 0
    %1386 = vmatpush1.bf16.msra.mxu0 0
    %1387 = vmatprep.subr.bf16.mxu0 0
    %1388 = vmatpush1.bf16.msra.mxu0 0
    %1389 = vmatprep.subr.bf16.mxu0 0
    %1390 = vmatpush1.bf16.msra.mxu0 0
    %1391 = vmatprep.subr.bf16.mxu0 0
    %1392 = vmatpush1.bf16.msra.mxu0 0
    %1393 = vmatprep.subr.bf16.mxu0 0
    %1394 = vmatpush1.bf16.msra.mxu0 %v1380
    %1395 = vmatprep.subr.bf16.mxu0 0
    %1396 = vmatpush1.bf16.msra.mxu0 %v1379
    %1397 = vmatprep.subr.bf16.mxu0 0
    %1398 = vmatpush2.bf16.msra.mxu0 0
    %1399 = vmatprep.subr.bf16.mxu0 0
    %1400 = vmatpush2.bf16.msra.mxu0 0
    %1401 = vmatprep.subr.bf16.mxu0 0
    %1402 = vmatpush2.bf16.msra.mxu0 0
    %1403 = vmatprep.subr.bf16.mxu0 0
    %1404 = vmatpush2.bf16.msra.mxu0 0
    %1405 = vmatprep.subr.bf16.mxu0 0
    %1406 = vmatpush2.bf16.msra.mxu0 0
    %1407 = vmatprep.subr.bf16.mxu0 0
    %1408 = vmatpush2.bf16.msra.mxu0 0
    %1409 = vmatprep.subr.bf16.mxu0 0
    %1410 = vmatpush2.bf16.msra.mxu0 0
    %1411 = vmatprep.subr.bf16.mxu0 0
    %1412 = vmatpush2.bf16.msra.mxu0 0
    %1413 = vmatprep.mubr.bf16.mxu0 0
    %1414 = vmatmul.mubr.bf16.gmra.mxu0 %v474
    %v1415 = vpop.f32.mrf.mxu0
    %v1416 = vadd.f32 0.0, %v1415
    %v1417 = vpop.f32.mrf.mxu0
    %v1418 = vpop.f32.mrf.mxu0
    %v1419 = vpop.f32.mrf.mxu0
    %1420 = vdwg.mxu0
    %v1421 = vpack.c.bf16 %v1416, %v1416
    %s1422 = scalar_lea.vmem [#allocation10], 128
    %v1423 = vld [vmem:[%s1422] sm:$0xf]
    %v1424 = vld [vmem:[%s1422 + $0x4] sm:$0xf]
    %v1425 = vld [vmem:[%s1422 + $0x8] sm:$0xf]
    %v1426 = vld [vmem:[%s1422 + $0xc] sm:$0xf]
    %v1427 = vld [vmem:[%s1422 + $0x10] sm:$0xf]
    %v1428 = vld [vmem:[%s1422 + $0x14] sm:$0xf]
    %v1429 = vld [vmem:[%s1422 + $0x18] sm:$0xf]
    %v1430 = vld [vmem:[%s1422 + $0x1c] sm:$0xf]
    %v1431 = vld [vmem:[%s1422 + $0x20] sm:$0xf]
    %v1432 = vld [vmem:[%s1422 + $0x24] sm:$0xf]
    %v1433 = vld [vmem:[%s1422 + $0x28] sm:$0xf]
    %v1434 = vld [vmem:[%s1422 + $0x2c] sm:$0xf]
    %v1435 = vld [vmem:[%s1422 + $0x30] sm:$0xf]
    %v1436 = vld [vmem:[%s1422 + $0x34] sm:$0xf]
    %v1437 = vld [vmem:[%s1422 + $0x38] sm:$0xf]
    %v1438 = vld [vmem:[%s1422 + $0x3c] sm:$0xf]
    %v1455 = vunpack.c.l.b16 %v1423
    %v1456 = vunpack.c.l.b16 %v1424
    %v1457 = vunpack.c.l.b16 %v1425
    %v1458 = vunpack.c.l.b16 %v1426
    %v1459 = vunpack.c.l.b16 %v1427
    %v1460 = vunpack.c.l.b16 %v1428
    %v1461 = vunpack.c.l.b16 %v1429
    %v1462 = vunpack.c.l.b16 %v1430
    %v1463 = vunpack.c.l.b16 %v1431
    %v1464 = vunpack.c.l.b16 %v1432
    %v1465 = vunpack.c.l.b16 %v1433
    %v1466 = vunpack.c.l.b16 %v1434
    %v1467 = vunpack.c.l.b16 %v1435
    %v1468 = vunpack.c.l.b16 %v1436
    %v1469 = vunpack.c.l.b16 %v1437
    %v1470 = vunpack.c.l.b16 %v1438
    %v1471 = vpack.c.b16 %v1456, %v1455
    %v1472 = vpack.c.b16 %v1458, %v1457
    %v1473 = vpack.c.b16 %v1460, %v1459
    %v1474 = vpack.c.b16 %v1462, %v1461
    %v1475 = vpack.c.b16 %v1464, %v1463
    %v1476 = vpack.c.b16 %v1466, %v1465
    %v1477 = vpack.c.b16 %v1468, %v1467
    %v1478 = vpack.c.b16 %v1470, %v1469
    %1487 = vmatprep.subr.bf16.mxu0 0
    %1488 = vmatpush1.bf16.msra.mxu0 %v1478
    %1489 = vmatprep.subr.bf16.mxu0 0
    %1490 = vmatpush1.bf16.msra.mxu0 %v1477
    %1491 = vmatprep.subr.bf16.mxu0 0
    %1492 = vmatpush1.bf16.msra.mxu0 %v1476
    %1493 = vmatprep.subr.bf16.mxu0 0
    %1494 = vmatpush1.bf16.msra.mxu0 %v1475
    %1495 = vmatprep.subr.bf16.mxu0 0
    %1496 = vmatpush1.bf16.msra.mxu0 %v1474
    %1497 = vmatprep.subr.bf16.mxu0 0
    %1498 = vmatpush1.bf16.msra.mxu0 %v1473
    %1499 = vmatprep.subr.bf16.mxu0 0
    %1500 = vmatpush1.bf16.msra.mxu0 %v1472
    %1501 = vmatprep.subr.bf16.mxu0 0
    %1502 = vmatpush1.bf16.msra.mxu0 %v1471
    %1503 = vmatprep.subr.bf16.mxu0 0
    %1504 = vmatpush2.bf16.msra.mxu0 0
    %1505 = vmatprep.subr.bf16.mxu0 0
    %1506 = vmatpush2.bf16.msra.mxu0 0
    %1507 = vmatprep.subr.bf16.mxu0 0
    %1508 = vmatpush2.bf16.msra.mxu0 0
    %1509 = vmatprep.subr.bf16.mxu0 0
    %1510 = vmatpush2.bf16.msra.mxu0 0
    %1511 = vmatprep.subr.bf16.mxu0 0
    %1512 = vmatpush2.bf16.msra.mxu0 0
    %1513 = vmatprep.subr.bf16.mxu0 0
    %1514 = vmatpush2.bf16.msra.mxu0 0
    %1515 = vmatprep.subr.bf16.mxu0 0
    %1516 = vmatpush2.bf16.msra.mxu0 0
    %1517 = vmatprep.subr.bf16.mxu0 0
    %1518 = vmatpush2.bf16.msra.mxu0 0
    %1519 = vmatprep.mubr.bf16.mxu0 0
    %1520 = vmatmul.mubr.bf16.gmra.mxu0 %v1421
    %v1521 = vpop.f32.mrf.mxu0
    %v1522 = vadd.f32 0.0, %v1521
    %v1523 = vpop.f32.mrf.mxu0
    %v1524 = vpop.f32.mrf.mxu0
    %v1525 = vpop.f32.mrf.mxu0
    %1526 = vdwg.mxu0
    %v1527 = vadd.f32 %v1069, %v1522
    %v1528 = vld [vmem:[%s8] sm:$0x1]
    %v1530 = vlaneseq
    %v1531 = vshrl.u32 %v1530, 7
    %v1532 = vsub.s32 0, %v1531
    %v1533 = vrot.slane %v1528, %v1532
    %v1535 = vadd.f32 %v1527, %v1533
    %v1536 = vmax.f32 %v1535, 0.0
    %v1537 = vpack.c.bf16 %v1536, %v1536
    %v1538 = vld [vmem:[#allocation12] sm:$0xf]
    %v1539 = vld [vmem:[#allocation12 + $0x4] sm:$0xf]
    %v1540 = vld [vmem:[#allocation12 + $0x8] sm:$0xf]
    %v1541 = vld [vmem:[#allocation12 + $0xc] sm:$0xf]
    %v1542 = vld [vmem:[#allocation12 + $0x10] sm:$0xf]
    %v1543 = vld [vmem:[#allocation12 + $0x14] sm:$0xf]
    %v1544 = vld [vmem:[#allocation12 + $0x18] sm:$0xf]
    %v1545 = vld [vmem:[#allocation12 + $0x1c] sm:$0xf]
    %v1546 = vld [vmem:[#allocation12 + $0x20] sm:$0xf]
    %v1547 = vld [vmem:[#allocation12 + $0x24] sm:$0xf]
    %v1548 = vld [vmem:[#allocation12 + $0x28] sm:$0xf]
    %v1549 = vld [vmem:[#allocation12 + $0x2c] sm:$0xf]
    %v1550 = vld [vmem:[#allocation12 + $0x30] sm:$0xf]
    %v1551 = vld [vmem:[#allocation12 + $0x34] sm:$0xf]
    %v1552 = vld [vmem:[#allocation12 + $0x38] sm:$0xf]
    %v1553 = vld [vmem:[#allocation12 + $0x3c] sm:$0xf]
    %v1554 = vld [vmem:[%s10] sm:$0x1]
    %v1556 = vlaneseq
    %v1557 = vshrl.u32 %v1556, 7
    %v1558 = vsub.s32 0, %v1557
    %v1559 = vrot.slane %v1554, %v1558
    %v1577 = vunpack.c.l.b16 %v1538
    %v1578 = vunpack.c.l.b16 %v1539
    %v1579 = vunpack.c.l.b16 %v1540
    %v1580 = vunpack.c.l.b16 %v1541
    %v1581 = vunpack.c.l.b16 %v1542
    %v1582 = vunpack.c.l.b16 %v1543
    %v1583 = vunpack.c.l.b16 %v1544
    %v1584 = vunpack.c.l.b16 %v1545
    %v1585 = vunpack.c.l.b16 %v1546
    %v1586 = vunpack.c.l.b16 %v1547
    %v1587 = vunpack.c.l.b16 %v1548
    %v1588 = vunpack.c.l.b16 %v1549
    %v1589 = vunpack.c.l.b16 %v1550
    %v1590 = vunpack.c.l.b16 %v1551
    %v1591 = vunpack.c.l.b16 %v1552
    %v1592 = vunpack.c.l.b16 %v1553
    %v1593 = vpack.c.b16 %v1578, %v1577
    %v1594 = vpack.c.b16 %v1580, %v1579
    %v1595 = vpack.c.b16 %v1582, %v1581
    %v1596 = vpack.c.b16 %v1584, %v1583
    %v1597 = vpack.c.b16 %v1586, %v1585
    %v1598 = vpack.c.b16 %v1588, %v1587
    %v1599 = vpack.c.b16 %v1590, %v1589
    %v1600 = vpack.c.b16 %v1592, %v1591
    %1609 = vmatprep.subr.bf16.mxu0 0
    %1610 = vmatpush1.bf16.msra.mxu0 %v1600
    %1611 = vmatprep.subr.bf16.mxu0 0
    %1612 = vmatpush1.bf16.msra.mxu0 %v1599
    %1613 = vmatprep.subr.bf16.mxu0 0
    %1614 = vmatpush1.bf16.msra.mxu0 %v1598
    %1615 = vmatprep.subr.bf16.mxu0 0
    %1616 = vmatpush1.bf16.msra.mxu0 %v1597
    %1617 = vmatprep.subr.bf16.mxu0 0
    %1618 = vmatpush1.bf16.msra.mxu0 %v1596
    %1619 = vmatprep.subr.bf16.mxu0 0
    %1620 = vmatpush1.bf16.msra.mxu0 %v1595
    %1621 = vmatprep.subr.bf16.mxu0 0
    %1622 = vmatpush1.bf16.msra.mxu0 %v1594
    %1623 = vmatprep.subr.bf16.mxu0 0
    %1624 = vmatpush1.bf16.msra.mxu0 %v1593
    %1625 = vmatprep.subr.bf16.mxu0 0
    %1626 = vmatpush2.bf16.msra.mxu0 0
    %1627 = vmatprep.subr.bf16.mxu0 0
    %1628 = vmatpush2.bf16.msra.mxu0 0
    %1629 = vmatprep.subr.bf16.mxu0 0
    %1630 = vmatpush2.bf16.msra.mxu0 0
    %1631 = vmatprep.subr.bf16.mxu0 0
    %1632 = vmatpush2.bf16.msra.mxu0 0
    %1633 = vmatprep.subr.bf16.mxu0 0
    %1634 = vmatpush2.bf16.msra.mxu0 0
    %1635 = vmatprep.subr.bf16.mxu0 0
    %1636 = vmatpush2.bf16.msra.mxu0 0
    %1637 = vmatprep.subr.bf16.mxu0 0
    %1638 = vmatpush2.bf16.msra.mxu0 0
    %1639 = vmatprep.subr.bf16.mxu0 0
    %1640 = vmatpush2.bf16.msra.mxu0 0
    %1641 = vmatprep.mubr.bf16.mxu0 0
    %1642 = vmatmul.mubr.bf16.gmra.mxu0 %v1537
    %v1643 = vpop.f32.mrf.mxu0
    %v1644 = vadd.f32 %v1559, %v1643
    %v1645 = vpop.f32.mrf.mxu0
    %v1646 = vpop.f32.mrf.mxu0
    %v1647 = vpop.f32.mrf.mxu0
    %1648 = vdwg.mxu0
    %1649 = vmax.xlane.f32.xlu0 %v1644
    %v1650 = vpop.xlane.xlu0 %1649
    %v1651 = vsub.f32 %v1644, %v1650
    %v1652 = vmul.f32 %v1651, 1.442695
    %v1653 = vpow.pop %v1652
    %1654 = vadd.xlane.f32.xlu0 %v1653
    %v1655 = vpop.xlane.xlu0 %1654
    %v1656 = vlog2.pop %v1655
    %v1657 = vmul.f32 %v1656, 0.6931472
    %v1658 = vadd.f32 %v1657, %v1650
    %v1659 = vsub.f32 %v1644, %v1658
    %1660 = vst [vmem:[%s11] sm:$0xff] %v1659
    // Predicated region
    $region74: #{gin0_forward.1} parent=1 // pred_check
      _
    $region75: #{gin0_forward.1} parent=1 // pred_check_branch
      %1662 = sbr.rel (0) target = $region77
    $region76: #{gin0_forward.1} parent=1 // pred_region
      _
    $region77: #{gin0_forward.1} parent=1 // pred_fallthru
      _
    // Predicated region
    $region78: #{gin0_forward.1} parent=1 // pred_check
      _
    $region79: #{gin0_forward.1} parent=1 // pred_check_branch
      %1664 = sbr.rel (0) target = $region81
    $region80: #{gin0_forward.1} parent=1 // pred_region
      _
    $region81: #{gin0_forward.1} parent=1 // pred_fallthru
      _
    %1665 = vsyncpa [#allocation3], 1
    %1666 = vsyncpa [#allocation5], 1
    %1667 = vsyncpa [#allocation8], 1
    %1668 = vsyncpa [#allocation11], 1

</llo_original>
